<compile_context>
chip_gen: v6e
topology: v6e:2x2x1
jax: 0.10.0
libtpu: 0.0.40
codegen_flags: <defaults>
</compile_context>

<pallas_src>
import functools

import jax
import jax.numpy as jnp
from jax import lax
from jax.experimental import pallas as pl
from jax.experimental.pallas import tpu as pltpu


def _lstm2_kernel(x_ref, wx1_ref, b1_ref, wbig_ref, b2_ref, out_ref,
                  *, B, T, H1, H2):
    """Whole 2-layer LSTM forward in one invocation (all operands in VMEM).

    x_ref:    (T*B, D)                time-major flattened input
    wx1_ref:  (D, 4*H1)               layer-1 input weights (transposed)
    b1_ref:   (1, 4*H1)               layer-1 fused bias (b_ih + b_hh)
    wbig_ref: (H1+H2, 4*H1 + 4*H2)    fused [[Wh1ᵀ, Wx2ᵀ], [0, Wh2ᵀ]]
    b2_ref:   (1, 4*H2)               layer-2 fused bias
    out_ref:  (B, T*H2)               layer-2 hidden states, lane-dense
    """
    # Hoisted loads / broadcasts (JAX does not CSE these inside loops).
    wbig = wbig_ref[...]                                     # (H1+H2, 4H1+4H2)
    b2 = jnp.broadcast_to(b2_ref[...], (B, 4 * H2))          # (B, 4*H2)

    # Hoisted layer-1 input projection + fused bias: one matmul over all T*B
    # rows instead of T tiny matmuls on the serial recurrence path.
    gx1 = (jnp.dot(x_ref[...], wx1_ref[...],
                   preferred_element_type=jnp.float32)
           + b1_ref[...])                                    # (T*B, 4*H1)

    def cell(g, c, H):
        # PyTorch gate order (i, f, g, o).  Full-width sigmoid (i/f/o slices
        # used), tanh only on the g-gate slice.
        sg = jax.nn.sigmoid(g)
        gg = jnp.tanh(g[:, 2 * H:3 * H])
        c_new = sg[:, H:2 * H] * c + sg[:, 0:H] * gg
        h_new = sg[:, 3 * H:4 * H] * jnp.tanh(c_new)
        return h_new, c_new

    # t = 0 layer-1 step: initial hidden state is zero, so the gates are just
    # the precomputed input projection (matches LSTM_Block.init_hidden).
    h1, c1 = cell(gx1[0:B, :], jnp.zeros((B, H1), jnp.float32), H1)
    h2 = jnp.zeros((B, H2), jnp.float32)
    c2 = jnp.zeros((B, H2), jnp.float32)

    outs = []
    # Fully-unrolled static time loop with a one-step skew: the single fused
    # matmul at step t yields layer-2(t) gates and the layer-1(t+1) hidden
    # contribution.
    for t in range(T):
        lhs = jnp.concatenate([h1, h2], axis=-1)             # (B, H1+H2)
        G = jnp.dot(lhs, wbig,
                    preferred_element_type=jnp.float32)      # (B, 4H1+4H2)

        # ---- layer 2, step t: gates = h1(t) @ Wx2ᵀ + h2(t-1) @ Wh2ᵀ + b2
        h2, c2 = cell(G[:, 4 * H1:] + b2, c2, H2)
        outs.append(h2)

        # ---- layer 1, step t+1: gates = gx1(t+1) + h1(t) @ Wh1ᵀ
        if t + 1 < T:
            h1, c1 = cell(gx1[(t + 1) * B:(t + 2) * B, :] + G[:, :4 * H1],
                          c1, H1)

    # Single lane-dense store: (B, T*H2) with T*H2 a multiple of 128.
    out_ref[...] = jnp.concatenate(outs, axis=-1).astype(out_ref.dtype)


def lstm_block_forward(x_btd, params):
    """x_btd: (B, T, D) float32 -> (B, T, H2) float32 (batch_first)."""
    B, T, D = x_btd.shape
    H1 = params["b1"].shape[-1] // 4
    H2 = params["b2"].shape[-1] // 4

    # Wrapper-side layout plumbing (free): time-major flatten of the input so
    # the kernel never reshapes and per-step gate rows are static slices.
    x_tb = jnp.transpose(x_btd, (1, 0, 2)).reshape(T * B, D)

    vmem = pl.BlockSpec(memory_space=pltpu.MemorySpace.VMEM)
    kernel = functools.partial(_lstm2_kernel, B=B, T=T, H1=H1, H2=H2)
    out_flat = pl.pallas_call(
        kernel,
        out_shape=jax.ShapeDtypeStruct((B, T * H2), jnp.float32),
        in_specs=[vmem] * 5,
        out_specs=vmem,
    )(x_tb, params["wx1"], params["b1"], params["w_big"], params["b2"])

    # Free, row-major-consistent unflatten of the lane-dense output.
    return out_flat.reshape(B, T, H2)


# ------------------------- pure-JAX reference -------------------------------
def _lstm_layer_ref(x_btd, w_ih, w_hh, b_ih, b_hh):
    B, T, D = x_btd.shape
    H = w_hh.shape[1]

    def step(carry, x_t):
        h, c = carry
        g = x_t @ w_ih.T + h @ w_hh.T + b_ih + b_hh
        i = jax.nn.sigmoid(g[:, :H])
        f = jax.nn.sigmoid(g[:, H:2 * H])
        gg = jnp.tanh(g[:, 2 * H:3 * H])
        o = jax.nn.sigmoid(g[:, 3 * H:])
        c = f * c + i * gg
        h = o * jnp.tanh(c)
        return (h, c), h

    x_tbd = jnp.transpose(x_btd, (1, 0, 2))
    (_, _), hs = lax.scan(step, (jnp.zeros((B, H)), jnp.zeros((B, H))), x_tbd)
    return jnp.transpose(hs, (1, 0, 2))


def _ref_forward(x_btd, raw):
    out1 = _lstm_layer_ref(x_btd, raw["w_ih1"], raw["w_hh1"],
                           raw["b_ih1"], raw["b_hh1"])
    out2 = _lstm_layer_ref(out1, raw["w_ih2"], raw["w_hh2"],
                           raw["b_ih2"], raw["b_hh2"])
    return out2


# ------------------------------ main ----------------------------------------
if __name__ == "__main__":
    # Shapes implied by the module: x_pm = (batch, input_len, num_stations)
    B, T = 2, 8                 # batch, input_len
    D = 4                       # num_stations (LSTM-1 input size)
    H1, H2 = 32, 32             # config['mlae_model']['lstm']['hidden_size']

    key = jax.random.PRNGKey(0)
    ks = jax.random.split(key, 9)

    def uni(k, shape, h):
        bound = 1.0 / jnp.sqrt(h)
        return jax.random.uniform(k, shape, jnp.float32, -bound, bound)

    # PyTorch-layout parameters (weight_ih: (4H, in), gate order i,f,g,o)
    raw = dict(
        w_ih1=uni(ks[0], (4 * H1, D), H1),
        w_hh1=uni(ks[1], (4 * H1, H1), H1),
        b_ih1=uni(ks[2], (4 * H1,), H1),
        b_hh1=uni(ks[3], (4 * H1,), H1),
        w_ih2=uni(ks[4], (4 * H2, H1), H2),
        w_hh2=uni(ks[5], (4 * H2, H2), H2),
        b_ih2=uni(ks[6], (4 * H2,), H2),
        b_hh2=uni(ks[7], (4 * H2,), H2),
    )

    # Kernel-layout parameters: pre-transposed layer-1 input weights, fused
    # biases, and the fused recurrent weight
    #   W_big = [[Wh1ᵀ, Wx2ᵀ], [0, Wh2ᵀ]]  of shape (H1+H2, 4*H1 + 4*H2).
    w_big = jnp.concatenate(
        [jnp.concatenate([raw["w_hh1"].T, raw["w_ih2"].T], axis=1),
         jnp.concatenate([jnp.zeros((H2, 4 * H1), jnp.float32),
                          raw["w_hh2"].T], axis=1)],
        axis=0)
    params = dict(
        wx1=raw["w_ih1"].T,                                   # (D, 4*H1)
        b1=(raw["b_ih1"] + raw["b_hh1"])[None, :],            # (1, 4*H1)
        w_big=w_big,                                          # (H1+H2, 4H1+4H2)
        b2=(raw["b_ih2"] + raw["b_hh2"])[None, :],            # (1, 4*H2)
    )

    x_pm = jax.random.normal(ks[8], (B, T, D), jnp.float32)

    out = lstm_block_forward(x_pm, params)
    out = jax.block_until_ready(out)

    ref = _ref_forward(x_pm, raw)
    assert out.shape == (B, T, H2)
    assert jnp.allclose(out, ref, rtol=1e-5, atol=1e-5), "mismatch vs reference"

    print("KERNEL_OK")
</pallas_src>

<mosaic_0001>
module attributes {stable_mosaic.version = 11 : i64} {
  func.func @_lstm2_kernel(%arg0: memref<16x4xf32, #tpu.memory_space<vmem>>, %arg1: memref<4x128xf32, #tpu.memory_space<vmem>>, %arg2: memref<1x128xf32, #tpu.memory_space<vmem>>, %arg3: memref<64x256xf32, #tpu.memory_space<vmem>>, %arg4: memref<1x128xf32, #tpu.memory_space<vmem>>, %arg5: memref<2x256xf32, #tpu.memory_space<vmem>>) attributes {dimension_semantics = [], scalar_prefetch = 0 : i64, scratch_operands = 0 : i64, tpu.core_type = #tpu.core_type<tc>} {
    %c0 = arith.constant 0 : index
    %c0_0 = arith.constant 0 : index
    %0 = vector.load %arg3[%c0, %c0_0] : memref<64x256xf32, #tpu.memory_space<vmem>>, vector<64x256xf32>
    %c0_1 = arith.constant 0 : index
    %c0_2 = arith.constant 0 : index
    %1 = vector.load %arg4[%c0_1, %c0_2] : memref<1x128xf32, #tpu.memory_space<vmem>>, vector<1x128xf32>
    %2 = vector.shape_cast %1 : vector<1x128xf32> to vector<1x128xf32>
    %3 = vector.broadcast %2 : vector<1x128xf32> to vector<2x128xf32>
    %c0_3 = arith.constant 0 : index
    %c0_4 = arith.constant 0 : index
    %4 = vector.load %arg0[%c0_3, %c0_4] : memref<16x4xf32, #tpu.memory_space<vmem>>, vector<16x4xf32>
    %c0_5 = arith.constant 0 : index
    %c0_6 = arith.constant 0 : index
    %5 = vector.load %arg1[%c0_5, %c0_6] : memref<4x128xf32, #tpu.memory_space<vmem>>, vector<4x128xf32>
    %cst = arith.constant dense<0.000000e+00> : vector<16x128xf32>
    %6 = tpu.matmul %4, %5, %cst {dimension_numbers = #tpu.dot_dimension_numbers<[1], [0], [0], [1], [0, 0, 1, 1], [], []>} : vector<16x4xf32>, vector<4x128xf32>, vector<16x128xf32> -> vector<16x128xf32>
    %c0_7 = arith.constant 0 : index
    %c0_8 = arith.constant 0 : index
    %7 = vector.load %arg2[%c0_7, %c0_8] : memref<1x128xf32, #tpu.memory_space<vmem>>, vector<1x128xf32>
    %8 = vector.broadcast %7 : vector<1x128xf32> to vector<16x128xf32>
    %9 = arith.addf %6, %8 : vector<16x128xf32>
    %10 = vector.extract_strided_slice %9 {offsets = [0, 0], sizes = [2, 128], strides = [1, 1]} : vector<16x128xf32> to vector<2x128xf32>
    %cst_9 = arith.constant 0.000000e+00 : f32
    %11 = vector.broadcast %cst_9 : f32 to vector<2x32xf32>
    %12 = arith.negf %10 : vector<2x128xf32>
    %13 = math.exp %12 : vector<2x128xf32>
    %cst_10 = arith.constant 1.000000e+00 : f32
    %14 = vector.broadcast %cst_10 : f32 to vector<2x128xf32>
    %15 = arith.addf %14, %13 : vector<2x128xf32>
    %16 = arith.divf %14, %15 : vector<2x128xf32>
    %17 = vector.extract_strided_slice %10 {offsets = [0, 64], sizes = [2, 32], strides = [1, 1]} : vector<2x128xf32> to vector<2x32xf32>
    %18 = math.tanh %17 : vector<2x32xf32>
    %19 = vector.extract_strided_slice %16 {offsets = [0, 32], sizes = [2, 32], strides = [1, 1]} : vector<2x128xf32> to vector<2x32xf32>
    %20 = arith.mulf %19, %11 : vector<2x32xf32>
    %21 = vector.extract_strided_slice %16 {offsets = [0, 0], sizes = [2, 32], strides = [1, 1]} : vector<2x128xf32> to vector<2x32xf32>
    %22 = arith.mulf %21, %18 : vector<2x32xf32>
    %23 = arith.addf %20, %22 : vector<2x32xf32>
    %24 = vector.extract_strided_slice %16 {offsets = [0, 96], sizes = [2, 32], strides = [1, 1]} : vector<2x128xf32> to vector<2x32xf32>
    %25 = math.tanh %23 : vector<2x32xf32>
    %26 = arith.mulf %24, %25 : vector<2x32xf32>
    %cst_11 = arith.constant 0.000000e+00 : f32
    %27 = vector.broadcast %cst_11 : f32 to vector<2x32xf32>
    %cst_12 = arith.constant 0.000000e+00 : f32
    %28 = vector.broadcast %cst_12 : f32 to vector<2x32xf32>
    %29 = tpu.concatenate %26, %27 in 1 : vector<2x32xf32>, vector<2x32xf32> -> vector<2x64xf32>
    %cst_13 = arith.constant dense<0.000000e+00> : vector<2x256xf32>
    %30 = tpu.matmul %29, %0, %cst_13 {dimension_numbers = #tpu.dot_dimension_numbers<[1], [0], [0], [1], [0, 0, 1, 1], [], []>} : vector<2x64xf32>, vector<64x256xf32>, vector<2x256xf32> -> vector<2x256xf32>
    %31 = vector.extract_strided_slice %30 {offsets = [0, 128], sizes = [2, 128], strides = [1, 1]} : vector<2x256xf32> to vector<2x128xf32>
    %32 = arith.addf %31, %3 : vector<2x128xf32>
    %33 = arith.negf %32 : vector<2x128xf32>
    %34 = math.exp %33 : vector<2x128xf32>
    %cst_14 = arith.constant 1.000000e+00 : f32
    %35 = vector.broadcast %cst_14 : f32 to vector<2x128xf32>
    %36 = arith.addf %35, %34 : vector<2x128xf32>
    %37 = arith.divf %35, %36 : vector<2x128xf32>
    %38 = vector.extract_strided_slice %32 {offsets = [0, 64], sizes = [2, 32], strides = [1, 1]} : vector<2x128xf32> to vector<2x32xf32>
    %39 = math.tanh %38 : vector<2x32xf32>
    %40 = vector.extract_strided_slice %37 {offsets = [0, 32], sizes = [2, 32], strides = [1, 1]} : vector<2x128xf32> to vector<2x32xf32>
    %41 = arith.mulf %40, %28 : vector<2x32xf32>
    %42 = vector.extract_strided_slice %37 {offsets = [0, 0], sizes = [2, 32], strides = [1, 1]} : vector<2x128xf32> to vector<2x32xf32>
    %43 = arith.mulf %42, %39 : vector<2x32xf32>
    %44 = arith.addf %41, %43 : vector<2x32xf32>
    %45 = vector.extract_strided_slice %37 {offsets = [0, 96], sizes = [2, 32], strides = [1, 1]} : vector<2x128xf32> to vector<2x32xf32>
    %46 = math.tanh %44 : vector<2x32xf32>
    %47 = arith.mulf %45, %46 : vector<2x32xf32>
    %48 = vector.extract_strided_slice %9 {offsets = [2, 0], sizes = [2, 128], strides = [1, 1]} : vector<16x128xf32> to vector<2x128xf32>
    %49 = vector.extract_strided_slice %30 {offsets = [0, 0], sizes = [2, 128], strides = [1, 1]} : vector<2x256xf32> to vector<2x128xf32>
    %50 = arith.addf %48, %49 : vector<2x128xf32>
    %51 = arith.negf %50 : vector<2x128xf32>
    %52 = math.exp %51 : vector<2x128xf32>
    %cst_15 = arith.constant 1.000000e+00 : f32
    %53 = vector.broadcast %cst_15 : f32 to vector<2x128xf32>
    %54 = arith.addf %53, %52 : vector<2x128xf32>
    %55 = arith.divf %53, %54 : vector<2x128xf32>
    %56 = vector.extract_strided_slice %50 {offsets = [0, 64], sizes = [2, 32], strides = [1, 1]} : vector<2x128xf32> to vector<2x32xf32>
    %57 = math.tanh %56 : vector<2x32xf32>
    %58 = vector.extract_strided_slice %55 {offsets = [0, 32], sizes = [2, 32], strides = [1, 1]} : vector<2x128xf32> to vector<2x32xf32>
    %59 = arith.mulf %58, %23 : vector<2x32xf32>
    %60 = vector.extract_strided_slice %55 {offsets = [0, 0], sizes = [2, 32], strides = [1, 1]} : vector<2x128xf32> to vector<2x32xf32>
    %61 = arith.mulf %60, %57 : vector<2x32xf32>
    %62 = arith.addf %59, %61 : vector<2x32xf32>
    %63 = vector.extract_strided_slice %55 {offsets = [0, 96], sizes = [2, 32], strides = [1, 1]} : vector<2x128xf32> to vector<2x32xf32>
    %64 = math.tanh %62 : vector<2x32xf32>
    %65 = arith.mulf %63, %64 : vector<2x32xf32>
    %66 = tpu.concatenate %65, %47 in 1 : vector<2x32xf32>, vector<2x32xf32> -> vector<2x64xf32>
    %cst_16 = arith.constant dense<0.000000e+00> : vector<2x256xf32>
    %67 = tpu.matmul %66, %0, %cst_16 {dimension_numbers = #tpu.dot_dimension_numbers<[1], [0], [0], [1], [0, 0, 1, 1], [], []>} : vector<2x64xf32>, vector<64x256xf32>, vector<2x256xf32> -> vector<2x256xf32>
    %68 = vector.extract_strided_slice %67 {offsets = [0, 128], sizes = [2, 128], strides = [1, 1]} : vector<2x256xf32> to vector<2x128xf32>
    %69 = arith.addf %68, %3 : vector<2x128xf32>
    %70 = arith.negf %69 : vector<2x128xf32>
    %71 = math.exp %70 : vector<2x128xf32>
    %cst_17 = arith.constant 1.000000e+00 : f32
    %72 = vector.broadcast %cst_17 : f32 to vector<2x128xf32>
    %73 = arith.addf %72, %71 : vector<2x128xf32>
    %74 = arith.divf %72, %73 : vector<2x128xf32>
    %75 = vector.extract_strided_slice %69 {offsets = [0, 64], sizes = [2, 32], strides = [1, 1]} : vector<2x128xf32> to vector<2x32xf32>
    %76 = math.tanh %75 : vector<2x32xf32>
    %77 = vector.extract_strided_slice %74 {offsets = [0, 32], sizes = [2, 32], strides = [1, 1]} : vector<2x128xf32> to vector<2x32xf32>
    %78 = arith.mulf %77, %44 : vector<2x32xf32>
    %79 = vector.extract_strided_slice %74 {offsets = [0, 0], sizes = [2, 32], strides = [1, 1]} : vector<2x128xf32> to vector<2x32xf32>
    %80 = arith.mulf %79, %76 : vector<2x32xf32>
    %81 = arith.addf %78, %80 : vector<2x32xf32>
    %82 = vector.extract_strided_slice %74 {offsets = [0, 96], sizes = [2, 32], strides = [1, 1]} : vector<2x128xf32> to vector<2x32xf32>
    %83 = math.tanh %81 : vector<2x32xf32>
    %84 = arith.mulf %82, %83 : vector<2x32xf32>
    %85 = vector.extract_strided_slice %9 {offsets = [4, 0], sizes = [2, 128], strides = [1, 1]} : vector<16x128xf32> to vector<2x128xf32>
    %86 = vector.extract_strided_slice %67 {offsets = [0, 0], sizes = [2, 128], strides = [1, 1]} : vector<2x256xf32> to vector<2x128xf32>
    %87 = arith.addf %85, %86 : vector<2x128xf32>
    %88 = arith.negf %87 : vector<2x128xf32>
    %89 = math.exp %88 : vector<2x128xf32>
    %cst_18 = arith.constant 1.000000e+00 : f32
    %90 = vector.broadcast %cst_18 : f32 to vector<2x128xf32>
    %91 = arith.addf %90, %89 : vector<2x128xf32>
    %92 = arith.divf %90, %91 : vector<2x128xf32>
    %93 = vector.extract_strided_slice %87 {offsets = [0, 64], sizes = [2, 32], strides = [1, 1]} : vector<2x128xf32> to vector<2x32xf32>
    %94 = math.tanh %93 : vector<2x32xf32>
    %95 = vector.extract_strided_slice %92 {offsets = [0, 32], sizes = [2, 32], strides = [1, 1]} : vector<2x128xf32> to vector<2x32xf32>
    %96 = arith.mulf %95, %62 : vector<2x32xf32>
    %97 = vector.extract_strided_slice %92 {offsets = [0, 0], sizes = [2, 32], strides = [1, 1]} : vector<2x128xf32> to vector<2x32xf32>
    %98 = arith.mulf %97, %94 : vector<2x32xf32>
    %99 = arith.addf %96, %98 : vector<2x32xf32>
    %100 = vector.extract_strided_slice %92 {offsets = [0, 96], sizes = [2, 32], strides = [1, 1]} : vector<2x128xf32> to vector<2x32xf32>
    %101 = math.tanh %99 : vector<2x32xf32>
    %102 = arith.mulf %100, %101 : vector<2x32xf32>
    %103 = tpu.concatenate %102, %84 in 1 : vector<2x32xf32>, vector<2x32xf32> -> vector<2x64xf32>
    %cst_19 = arith.constant dense<0.000000e+00> : vector<2x256xf32>
    %104 = tpu.matmul %103, %0, %cst_19 {dimension_numbers = #tpu.dot_dimension_numbers<[1], [0], [0], [1], [0, 0, 1, 1], [], []>} : vector<2x64xf32>, vector<64x256xf32>, vector<2x256xf32> -> vector<2x256xf32>
    %105 = vector.extract_strided_slice %104 {offsets = [0, 128], sizes = [2, 128], strides = [1, 1]} : vector<2x256xf32> to vector<2x128xf32>
    %106 = arith.addf %105, %3 : vector<2x128xf32>
    %107 = arith.negf %106 : vector<2x128xf32>
    %108 = math.exp %107 : vector<2x128xf32>
    %cst_20 = arith.constant 1.000000e+00 : f32
    %109 = vector.broadcast %cst_20 : f32 to vector<2x128xf32>
    %110 = arith.addf %109, %108 : vector<2x128xf32>
    %111 = arith.divf %109, %110 : vector<2x128xf32>
    %112 = vector.extract_strided_slice %106 {offsets = [0, 64], sizes = [2, 32], strides = [1, 1]} : vector<2x128xf32> to vector<2x32xf32>
    %113 = math.tanh %112 : vector<2x32xf32>
    %114 = vector.extract_strided_slice %111 {offsets = [0, 32], sizes = [2, 32], strides = [1, 1]} : vector<2x128xf32> to vector<2x32xf32>
    %115 = arith.mulf %114, %81 : vector<2x32xf32>
    %116 = vector.extract_strided_slice %111 {offsets = [0, 0], sizes = [2, 32], strides = [1, 1]} : vector<2x128xf32> to vector<2x32xf32>
    %117 = arith.mulf %116, %113 : vector<2x32xf32>
    %118 = arith.addf %115, %117 : vector<2x32xf32>
    %119 = vector.extract_strided_slice %111 {offsets = [0, 96], sizes = [2, 32], strides = [1, 1]} : vector<2x128xf32> to vector<2x32xf32>
    %120 = math.tanh %118 : vector<2x32xf32>
    %121 = arith.mulf %119, %120 : vector<2x32xf32>
    %122 = vector.extract_strided_slice %9 {offsets = [6, 0], sizes = [2, 128], strides = [1, 1]} : vector<16x128xf32> to vector<2x128xf32>
    %123 = vector.extract_strided_slice %104 {offsets = [0, 0], sizes = [2, 128], strides = [1, 1]} : vector<2x256xf32> to vector<2x128xf32>
    %124 = arith.addf %122, %123 : vector<2x128xf32>
    %125 = arith.negf %124 : vector<2x128xf32>
    %126 = math.exp %125 : vector<2x128xf32>
    %cst_21 = arith.constant 1.000000e+00 : f32
    %127 = vector.broadcast %cst_21 : f32 to vector<2x128xf32>
    %128 = arith.addf %127, %126 : vector<2x128xf32>
    %129 = arith.divf %127, %128 : vector<2x128xf32>
    %130 = vector.extract_strided_slice %124 {offsets = [0, 64], sizes = [2, 32], strides = [1, 1]} : vector<2x128xf32> to vector<2x32xf32>
    %131 = math.tanh %130 : vector<2x32xf32>
    %132 = vector.extract_strided_slice %129 {offsets = [0, 32], sizes = [2, 32], strides = [1, 1]} : vector<2x128xf32> to vector<2x32xf32>
    %133 = arith.mulf %132, %99 : vector<2x32xf32>
    %134 = vector.extract_strided_slice %129 {offsets = [0, 0], sizes = [2, 32], strides = [1, 1]} : vector<2x128xf32> to vector<2x32xf32>
    %135 = arith.mulf %134, %131 : vector<2x32xf32>
    %136 = arith.addf %133, %135 : vector<2x32xf32>
    %137 = vector.extract_strided_slice %129 {offsets = [0, 96], sizes = [2, 32], strides = [1, 1]} : vector<2x128xf32> to vector<2x32xf32>
    %138 = math.tanh %136 : vector<2x32xf32>
    %139 = arith.mulf %137, %138 : vector<2x32xf32>
    %140 = tpu.concatenate %139, %121 in 1 : vector<2x32xf32>, vector<2x32xf32> -> vector<2x64xf32>
    %cst_22 = arith.constant dense<0.000000e+00> : vector<2x256xf32>
    %141 = tpu.matmul %140, %0, %cst_22 {dimension_numbers = #tpu.dot_dimension_numbers<[1], [0], [0], [1], [0, 0, 1, 1], [], []>} : vector<2x64xf32>, vector<64x256xf32>, vector<2x256xf32> -> vector<2x256xf32>
    %142 = vector.extract_strided_slice %141 {offsets = [0, 128], sizes = [2, 128], strides = [1, 1]} : vector<2x256xf32> to vector<2x128xf32>
    %143 = arith.addf %142, %3 : vector<2x128xf32>
    %144 = arith.negf %143 : vector<2x128xf32>
    %145 = math.exp %144 : vector<2x128xf32>
    %cst_23 = arith.constant 1.000000e+00 : f32
    %146 = vector.broadcast %cst_23 : f32 to vector<2x128xf32>
    %147 = arith.addf %146, %145 : vector<2x128xf32>
    %148 = arith.divf %146, %147 : vector<2x128xf32>
    %149 = vector.extract_strided_slice %143 {offsets = [0, 64], sizes = [2, 32], strides = [1, 1]} : vector<2x128xf32> to vector<2x32xf32>
    %150 = math.tanh %149 : vector<2x32xf32>
    %151 = vector.extract_strided_slice %148 {offsets = [0, 32], sizes = [2, 32], strides = [1, 1]} : vector<2x128xf32> to vector<2x32xf32>
    %152 = arith.mulf %151, %118 : vector<2x32xf32>
    %153 = vector.extract_strided_slice %148 {offsets = [0, 0], sizes = [2, 32], strides = [1, 1]} : vector<2x128xf32> to vector<2x32xf32>
    %154 = arith.mulf %153, %150 : vector<2x32xf32>
    %155 = arith.addf %152, %154 : vector<2x32xf32>
    %156 = vector.extract_strided_slice %148 {offsets = [0, 96], sizes = [2, 32], strides = [1, 1]} : vector<2x128xf32> to vector<2x32xf32>
    %157 = math.tanh %155 : vector<2x32xf32>
    %158 = arith.mulf %156, %157 : vector<2x32xf32>
    %159 = vector.extract_strided_slice %9 {offsets = [8, 0], sizes = [2, 128], strides = [1, 1]} : vector<16x128xf32> to vector<2x128xf32>
    %160 = vector.extract_strided_slice %141 {offsets = [0, 0], sizes = [2, 128], strides = [1, 1]} : vector<2x256xf32> to vector<2x128xf32>
    %161 = arith.addf %159, %160 : vector<2x128xf32>
    %162 = arith.negf %161 : vector<2x128xf32>
    %163 = math.exp %162 : vector<2x128xf32>
    %cst_24 = arith.constant 1.000000e+00 : f32
    %164 = vector.broadcast %cst_24 : f32 to vector<2x128xf32>
    %165 = arith.addf %164, %163 : vector<2x128xf32>
    %166 = arith.divf %164, %165 : vector<2x128xf32>
    %167 = vector.extract_strided_slice %161 {offsets = [0, 64], sizes = [2, 32], strides = [1, 1]} : vector<2x128xf32> to vector<2x32xf32>
    %168 = math.tanh %167 : vector<2x32xf32>
    %169 = vector.extract_strided_slice %166 {offsets = [0, 32], sizes = [2, 32], strides = [1, 1]} : vector<2x128xf32> to vector<2x32xf32>
    %170 = arith.mulf %169, %136 : vector<2x32xf32>
    %171 = vector.extract_strided_slice %166 {offsets = [0, 0], sizes = [2, 32], strides = [1, 1]} : vector<2x128xf32> to vector<2x32xf32>
    %172 = arith.mulf %171, %168 : vector<2x32xf32>
    %173 = arith.addf %170, %172 : vector<2x32xf32>
    %174 = vector.extract_strided_slice %166 {offsets = [0, 96], sizes = [2, 32], strides = [1, 1]} : vector<2x128xf32> to vector<2x32xf32>
    %175 = math.tanh %173 : vector<2x32xf32>
    %176 = arith.mulf %174, %175 : vector<2x32xf32>
    %177 = tpu.concatenate %176, %158 in 1 : vector<2x32xf32>, vector<2x32xf32> -> vector<2x64xf32>
    %cst_25 = arith.constant dense<0.000000e+00> : vector<2x256xf32>
    %178 = tpu.matmul %177, %0, %cst_25 {dimension_numbers = #tpu.dot_dimension_numbers<[1], [0], [0], [1], [0, 0, 1, 1], [], []>} : vector<2x64xf32>, vector<64x256xf32>, vector<2x256xf32> -> vector<2x256xf32>
    %179 = vector.extract_strided_slice %178 {offsets = [0, 128], sizes = [2, 128], strides = [1, 1]} : vector<2x256xf32> to vector<2x128xf32>
    %180 = arith.addf %179, %3 : vector<2x128xf32>
    %181 = arith.negf %180 : vector<2x128xf32>
    %182 = math.exp %181 : vector<2x128xf32>
    %cst_26 = arith.constant 1.000000e+00 : f32
    %183 = vector.broadcast %cst_26 : f32 to vector<2x128xf32>
    %184 = arith.addf %183, %182 : vector<2x128xf32>
    %185 = arith.divf %183, %184 : vector<2x128xf32>
    %186 = vector.extract_strided_slice %180 {offsets = [0, 64], sizes = [2, 32], strides = [1, 1]} : vector<2x128xf32> to vector<2x32xf32>
    %187 = math.tanh %186 : vector<2x32xf32>
    %188 = vector.extract_strided_slice %185 {offsets = [0, 32], sizes = [2, 32], strides = [1, 1]} : vector<2x128xf32> to vector<2x32xf32>
    %189 = arith.mulf %188, %155 : vector<2x32xf32>
    %190 = vector.extract_strided_slice %185 {offsets = [0, 0], sizes = [2, 32], strides = [1, 1]} : vector<2x128xf32> to vector<2x32xf32>
    %191 = arith.mulf %190, %187 : vector<2x32xf32>
    %192 = arith.addf %189, %191 : vector<2x32xf32>
    %193 = vector.extract_strided_slice %185 {offsets = [0, 96], sizes = [2, 32], strides = [1, 1]} : vector<2x128xf32> to vector<2x32xf32>
    %194 = math.tanh %192 : vector<2x32xf32>
    %195 = arith.mulf %193, %194 : vector<2x32xf32>
    %196 = vector.extract_strided_slice %9 {offsets = [10, 0], sizes = [2, 128], strides = [1, 1]} : vector<16x128xf32> to vector<2x128xf32>
    %197 = vector.extract_strided_slice %178 {offsets = [0, 0], sizes = [2, 128], strides = [1, 1]} : vector<2x256xf32> to vector<2x128xf32>
    %198 = arith.addf %196, %197 : vector<2x128xf32>
    %199 = arith.negf %198 : vector<2x128xf32>
    %200 = math.exp %199 : vector<2x128xf32>
    %cst_27 = arith.constant 1.000000e+00 : f32
    %201 = vector.broadcast %cst_27 : f32 to vector<2x128xf32>
    %202 = arith.addf %201, %200 : vector<2x128xf32>
    %203 = arith.divf %201, %202 : vector<2x128xf32>
    %204 = vector.extract_strided_slice %198 {offsets = [0, 64], sizes = [2, 32], strides = [1, 1]} : vector<2x128xf32> to vector<2x32xf32>
    %205 = math.tanh %204 : vector<2x32xf32>
    %206 = vector.extract_strided_slice %203 {offsets = [0, 32], sizes = [2, 32], strides = [1, 1]} : vector<2x128xf32> to vector<2x32xf32>
    %207 = arith.mulf %206, %173 : vector<2x32xf32>
    %208 = vector.extract_strided_slice %203 {offsets = [0, 0], sizes = [2, 32], strides = [1, 1]} : vector<2x128xf32> to vector<2x32xf32>
    %209 = arith.mulf %208, %205 : vector<2x32xf32>
    %210 = arith.addf %207, %209 : vector<2x32xf32>
    %211 = vector.extract_strided_slice %203 {offsets = [0, 96], sizes = [2, 32], strides = [1, 1]} : vector<2x128xf32> to vector<2x32xf32>
    %212 = math.tanh %210 : vector<2x32xf32>
    %213 = arith.mulf %211, %212 : vector<2x32xf32>
    %214 = tpu.concatenate %213, %195 in 1 : vector<2x32xf32>, vector<2x32xf32> -> vector<2x64xf32>
    %cst_28 = arith.constant dense<0.000000e+00> : vector<2x256xf32>
    %215 = tpu.matmul %214, %0, %cst_28 {dimension_numbers = #tpu.dot_dimension_numbers<[1], [0], [0], [1], [0, 0, 1, 1], [], []>} : vector<2x64xf32>, vector<64x256xf32>, vector<2x256xf32> -> vector<2x256xf32>
    %216 = vector.extract_strided_slice %215 {offsets = [0, 128], sizes = [2, 128], strides = [1, 1]} : vector<2x256xf32> to vector<2x128xf32>
    %217 = arith.addf %216, %3 : vector<2x128xf32>
    %218 = arith.negf %217 : vector<2x128xf32>
    %219 = math.exp %218 : vector<2x128xf32>
    %cst_29 = arith.constant 1.000000e+00 : f32
    %220 = vector.broadcast %cst_29 : f32 to vector<2x128xf32>
    %221 = arith.addf %220, %219 : vector<2x128xf32>
    %222 = arith.divf %220, %221 : vector<2x128xf32>
    %223 = vector.extract_strided_slice %217 {offsets = [0, 64], sizes = [2, 32], strides = [1, 1]} : vector<2x128xf32> to vector<2x32xf32>
    %224 = math.tanh %223 : vector<2x32xf32>
    %225 = vector.extract_strided_slice %222 {offsets = [0, 32], sizes = [2, 32], strides = [1, 1]} : vector<2x128xf32> to vector<2x32xf32>
    %226 = arith.mulf %225, %192 : vector<2x32xf32>
    %227 = vector.extract_strided_slice %222 {offsets = [0, 0], sizes = [2, 32], strides = [1, 1]} : vector<2x128xf32> to vector<2x32xf32>
    %228 = arith.mulf %227, %224 : vector<2x32xf32>
    %229 = arith.addf %226, %228 : vector<2x32xf32>
    %230 = vector.extract_strided_slice %222 {offsets = [0, 96], sizes = [2, 32], strides = [1, 1]} : vector<2x128xf32> to vector<2x32xf32>
    %231 = math.tanh %229 : vector<2x32xf32>
    %232 = arith.mulf %230, %231 : vector<2x32xf32>
    %233 = vector.extract_strided_slice %9 {offsets = [12, 0], sizes = [2, 128], strides = [1, 1]} : vector<16x128xf32> to vector<2x128xf32>
    %234 = vector.extract_strided_slice %215 {offsets = [0, 0], sizes = [2, 128], strides = [1, 1]} : vector<2x256xf32> to vector<2x128xf32>
    %235 = arith.addf %233, %234 : vector<2x128xf32>
    %236 = arith.negf %235 : vector<2x128xf32>
    %237 = math.exp %236 : vector<2x128xf32>
    %cst_30 = arith.constant 1.000000e+00 : f32
    %238 = vector.broadcast %cst_30 : f32 to vector<2x128xf32>
    %239 = arith.addf %238, %237 : vector<2x128xf32>
    %240 = arith.divf %238, %239 : vector<2x128xf32>
    %241 = vector.extract_strided_slice %235 {offsets = [0, 64], sizes = [2, 32], strides = [1, 1]} : vector<2x128xf32> to vector<2x32xf32>
    %242 = math.tanh %241 : vector<2x32xf32>
    %243 = vector.extract_strided_slice %240 {offsets = [0, 32], sizes = [2, 32], strides = [1, 1]} : vector<2x128xf32> to vector<2x32xf32>
    %244 = arith.mulf %243, %210 : vector<2x32xf32>
    %245 = vector.extract_strided_slice %240 {offsets = [0, 0], sizes = [2, 32], strides = [1, 1]} : vector<2x128xf32> to vector<2x32xf32>
    %246 = arith.mulf %245, %242 : vector<2x32xf32>
    %247 = arith.addf %244, %246 : vector<2x32xf32>
    %248 = vector.extract_strided_slice %240 {offsets = [0, 96], sizes = [2, 32], strides = [1, 1]} : vector<2x128xf32> to vector<2x32xf32>
    %249 = math.tanh %247 : vector<2x32xf32>
    %250 = arith.mulf %248, %249 : vector<2x32xf32>
    %251 = tpu.concatenate %250, %232 in 1 : vector<2x32xf32>, vector<2x32xf32> -> vector<2x64xf32>
    %cst_31 = arith.constant dense<0.000000e+00> : vector<2x256xf32>
    %252 = tpu.matmul %251, %0, %cst_31 {dimension_numbers = #tpu.dot_dimension_numbers<[1], [0], [0], [1], [0, 0, 1, 1], [], []>} : vector<2x64xf32>, vector<64x256xf32>, vector<2x256xf32> -> vector<2x256xf32>
    %253 = vector.extract_strided_slice %252 {offsets = [0, 128], sizes = [2, 128], strides = [1, 1]} : vector<2x256xf32> to vector<2x128xf32>
    %254 = arith.addf %253, %3 : vector<2x128xf32>
    %255 = arith.negf %254 : vector<2x128xf32>
    %256 = math.exp %255 : vector<2x128xf32>
    %cst_32 = arith.constant 1.000000e+00 : f32
    %257 = vector.broadcast %cst_32 : f32 to vector<2x128xf32>
    %258 = arith.addf %257, %256 : vector<2x128xf32>
    %259 = arith.divf %257, %258 : vector<2x128xf32>
    %260 = vector.extract_strided_slice %254 {offsets = [0, 64], sizes = [2, 32], strides = [1, 1]} : vector<2x128xf32> to vector<2x32xf32>
    %261 = math.tanh %260 : vector<2x32xf32>
    %262 = vector.extract_strided_slice %259 {offsets = [0, 32], sizes = [2, 32], strides = [1, 1]} : vector<2x128xf32> to vector<2x32xf32>
    %263 = arith.mulf %262, %229 : vector<2x32xf32>
    %264 = vector.extract_strided_slice %259 {offsets = [0, 0], sizes = [2, 32], strides = [1, 1]} : vector<2x128xf32> to vector<2x32xf32>
    %265 = arith.mulf %264, %261 : vector<2x32xf32>
    %266 = arith.addf %263, %265 : vector<2x32xf32>
    %267 = vector.extract_strided_slice %259 {offsets = [0, 96], sizes = [2, 32], strides = [1, 1]} : vector<2x128xf32> to vector<2x32xf32>
    %268 = math.tanh %266 : vector<2x32xf32>
    %269 = arith.mulf %267, %268 : vector<2x32xf32>
    %270 = vector.extract_strided_slice %9 {offsets = [14, 0], sizes = [2, 128], strides = [1, 1]} : vector<16x128xf32> to vector<2x128xf32>
    %271 = vector.extract_strided_slice %252 {offsets = [0, 0], sizes = [2, 128], strides = [1, 1]} : vector<2x256xf32> to vector<2x128xf32>
    %272 = arith.addf %270, %271 : vector<2x128xf32>
    %273 = arith.negf %272 : vector<2x128xf32>
    %274 = math.exp %273 : vector<2x128xf32>
    %cst_33 = arith.constant 1.000000e+00 : f32
    %275 = vector.broadcast %cst_33 : f32 to vector<2x128xf32>
    %276 = arith.addf %275, %274 : vector<2x128xf32>
    %277 = arith.divf %275, %276 : vector<2x128xf32>
    %278 = vector.extract_strided_slice %272 {offsets = [0, 64], sizes = [2, 32], strides = [1, 1]} : vector<2x128xf32> to vector<2x32xf32>
    %279 = math.tanh %278 : vector<2x32xf32>
    %280 = vector.extract_strided_slice %277 {offsets = [0, 32], sizes = [2, 32], strides = [1, 1]} : vector<2x128xf32> to vector<2x32xf32>
    %281 = arith.mulf %280, %247 : vector<2x32xf32>
    %282 = vector.extract_strided_slice %277 {offsets = [0, 0], sizes = [2, 32], strides = [1, 1]} : vector<2x128xf32> to vector<2x32xf32>
    %283 = arith.mulf %282, %279 : vector<2x32xf32>
    %284 = arith.addf %281, %283 : vector<2x32xf32>
    %285 = vector.extract_strided_slice %277 {offsets = [0, 96], sizes = [2, 32], strides = [1, 1]} : vector<2x128xf32> to vector<2x32xf32>
    %286 = math.tanh %284 : vector<2x32xf32>
    %287 = arith.mulf %285, %286 : vector<2x32xf32>
    %288 = tpu.concatenate %287, %269 in 1 : vector<2x32xf32>, vector<2x32xf32> -> vector<2x64xf32>
    %cst_34 = arith.constant dense<0.000000e+00> : vector<2x256xf32>
    %289 = tpu.matmul %288, %0, %cst_34 {dimension_numbers = #tpu.dot_dimension_numbers<[1], [0], [0], [1], [0, 0, 1, 1], [], []>} : vector<2x64xf32>, vector<64x256xf32>, vector<2x256xf32> -> vector<2x256xf32>
    %290 = vector.extract_strided_slice %289 {offsets = [0, 128], sizes = [2, 128], strides = [1, 1]} : vector<2x256xf32> to vector<2x128xf32>
    %291 = arith.addf %290, %3 : vector<2x128xf32>
    %292 = arith.negf %291 : vector<2x128xf32>
    %293 = math.exp %292 : vector<2x128xf32>
    %cst_35 = arith.constant 1.000000e+00 : f32
    %294 = vector.broadcast %cst_35 : f32 to vector<2x128xf32>
    %295 = arith.addf %294, %293 : vector<2x128xf32>
    %296 = arith.divf %294, %295 : vector<2x128xf32>
    %297 = vector.extract_strided_slice %291 {offsets = [0, 64], sizes = [2, 32], strides = [1, 1]} : vector<2x128xf32> to vector<2x32xf32>
    %298 = math.tanh %297 : vector<2x32xf32>
    %299 = vector.extract_strided_slice %296 {offsets = [0, 32], sizes = [2, 32], strides = [1, 1]} : vector<2x128xf32> to vector<2x32xf32>
    %300 = arith.mulf %299, %266 : vector<2x32xf32>
    %301 = vector.extract_strided_slice %296 {offsets = [0, 0], sizes = [2, 32], strides = [1, 1]} : vector<2x128xf32> to vector<2x32xf32>
    %302 = arith.mulf %301, %298 : vector<2x32xf32>
    %303 = arith.addf %300, %302 : vector<2x32xf32>
    %304 = vector.extract_strided_slice %296 {offsets = [0, 96], sizes = [2, 32], strides = [1, 1]} : vector<2x128xf32> to vector<2x32xf32>
    %305 = math.tanh %303 : vector<2x32xf32>
    %306 = arith.mulf %304, %305 : vector<2x32xf32>
    %307 = tpu.concatenate %47, %84, %121, %158, %195, %232, %269, %306 in 1 : vector<2x32xf32>, vector<2x32xf32>, vector<2x32xf32>, vector<2x32xf32>, vector<2x32xf32>, vector<2x32xf32>, vector<2x32xf32>, vector<2x32xf32> -> vector<2x256xf32>
    %c0_36 = arith.constant 0 : index
    %c0_37 = arith.constant 0 : index
    %308 = vector.load %arg5[%c0_36, %c0_37] : memref<2x256xf32, #tpu.memory_space<vmem>>, vector<2x256xf32>
    tpu.vector_store %arg5[%c0_36, %c0_37], %307 {strides = array<i32>} : memref<2x256xf32, #tpu.memory_space<vmem>>, vector<2x256xf32>,
    return
  }
}

</mosaic_0001>

<llo_original>
// kernel: tpu_custom_call.1
$region0: #{tpu_custom_call.1}
  #allocation0 [shape = 'u32[]', space=smem, size = 0x4, offset = 0x4, fixed_abs, tag = 'smem constant byte address 0x4 - core index']
  #allocation1 [shape = 'u32[144,128]{1,0:T(1,128)}', space=vmem, size = 0x12000, scoped, tag = 'internal scratch']
  %s0 = inlined_call_operand.vmem [shape: f32[16,4], index: 0, kind: input, shape index: {}]
  %s1 = inlined_call_operand.vmem [shape: f32[4,128], index: 1, kind: input, shape index: {}]
  %s2 = inlined_call_operand.vmem [shape: f32[1,128], index: 2, kind: input, shape index: {}]
  %s3 = inlined_call_operand.hbm [shape: f32[64,256], index: 3, kind: input, shape index: {}]
  %s4 = inlined_call_operand.vmem [shape: f32[1,128], index: 4, kind: input, shape index: {}]
  %s5 = inlined_call_operand.hbm [shape: f32[2,256], index: 5, kind: output, shape index: {}]
  %s6 = sld [smem:[#allocation0]]
  $region34: #{tpu_custom_call.1} parent=0
    _
  %s8 = ssub.s32 1, %s6
  %s9 = scalar_select 0, %s8, %s6
  $region1: #{tpu_custom_call.1} parent=0
    #allocation2 [shape = 'u8[65536]{0}', space=vmem, size = 0x10000, scoped, tag = 'input window, operand 3, single buffered']
    #allocation3 [shape = 's32[1]{0}', space=sflag, size = 0x4, scoped, tag = 'scoped memory for tpu_custom_call.1']
    #allocation4 [shape = 's32[1]{0}', space=sflag, size = 0x4, scoped, tag = 'scoped memory for tpu_custom_call.1']
    #allocation5 [shape = 'u8[2048]{0}', space=vmem, size = 0x800, scoped, tag = 'output window, operand 0, single buffered']
    %10 = vsyncpa [#allocation3], 0
    %11 = vsyncpa [#allocation4], 0
    // Predicated region
    $region2: #{tpu_custom_call.1} parent=1 // pred_check
      _
    $region3: #{tpu_custom_call.1} parent=1 // pred_check_branch
      %13 = sbr.rel (0) target = $region5
    $region4: #{tpu_custom_call.1} parent=1 // pred_region
      _
    $region5: #{tpu_custom_call.1} parent=1 // pred_fallthru
      _
    // Predicated region
    $region6: #{tpu_custom_call.1} parent=1 // pred_check
      _
    $region7: #{tpu_custom_call.1} parent=1 // pred_check_branch
      %15 = sbr.rel (0) target = $region9
    $region8: #{tpu_custom_call.1} parent=1 // pred_region
      _
    $region9: #{tpu_custom_call.1} parent=1 // pred_fallthru
      _
    // Predicated region
    $region10: #{tpu_custom_call.1} parent=1 // pred_check
      _
    $region11: #{tpu_custom_call.1} parent=1 // pred_check_branch
      %17 = sbr.rel (0) target = $region13
    $region12: #{tpu_custom_call.1} parent=1 // pred_region
      _
    $region13: #{tpu_custom_call.1} parent=1 // pred_fallthru
      _
    // Predicated region
    $region14: #{tpu_custom_call.1} parent=1 // pred_check
      _
    $region15: #{tpu_custom_call.1} parent=1 // pred_check_branch
      %19 = sbr.rel (0) target = $region17
    $region16: #{tpu_custom_call.1} parent=1 // pred_region
      %s21 = ssub.s32 2048, 2048
      %22 = vsyncadd [#allocation3], %s21
      %s23 = sshll.u32 [#allocation2], 4
      %s24 = int_to_ptr.vmem [resolvable:$true] %s23
      %29 = dma.hbm_to_vmem [thread:$0]  %s3, 2048, %s24, [#allocation3], 256, 256, 16
    $region17: #{tpu_custom_call.1} parent=1 // pred_fallthru
      _
    // Predicated region
    $region18: #{tpu_custom_call.1} parent=1 // pred_check
      _
    $region19: #{tpu_custom_call.1} parent=1 // pred_check_branch
      %31 = sbr.rel (0) target = $region21
    $region20: #{tpu_custom_call.1} parent=1 // pred_region
      _
    $region21: #{tpu_custom_call.1} parent=1 // pred_fallthru
      _
    // Predicated region
    $region22: #{tpu_custom_call.1} parent=1 // pred_check
      _
    $region23: #{tpu_custom_call.1} parent=1 // pred_check_branch
      %33 = sbr.rel (0) target = $region25
    $region24: #{tpu_custom_call.1} parent=1 // pred_region
      %34 = dma.done [#allocation3], 2048
    $region25: #{tpu_custom_call.1} parent=1 // pred_fallthru
      _
    %v35 = vld [vmem:[#allocation2] sm:$0xff]
    %v36 = vld [vmem:[#allocation2 + $0x8] sm:$0xff]
    %v37 = vld [vmem:[#allocation2 + $0x10] sm:$0xff]
    %v38 = vld [vmem:[#allocation2 + $0x18] sm:$0xff]
    %v39 = vld [vmem:[#allocation2 + $0x20] sm:$0xff]
    %v40 = vld [vmem:[#allocation2 + $0x28] sm:$0xff]
    %v41 = vld [vmem:[#allocation2 + $0x30] sm:$0xff]
    %v42 = vld [vmem:[#allocation2 + $0x38] sm:$0xff]
    %v43 = vld [vmem:[#allocation2 + $0x40] sm:$0xff]
    %v44 = vld [vmem:[#allocation2 + $0x48] sm:$0xff]
    %v45 = vld [vmem:[#allocation2 + $0x50] sm:$0xff]
    %v46 = vld [vmem:[#allocation2 + $0x58] sm:$0xff]
    %v47 = vld [vmem:[#allocation2 + $0x60] sm:$0xff]
    %v48 = vld [vmem:[#allocation2 + $0x68] sm:$0xff]
    %v49 = vld [vmem:[#allocation2 + $0x70] sm:$0xff]
    %v50 = vld [vmem:[#allocation2 + $0x78] sm:$0xff]
    %v51 = vld [vmem:[%s4] sm:$0x1]
    %v53 = vlaneseq
    %v54 = vshrl.u32 %v53, 7
    %v55 = vsub.s32 0, %v54
    %v56 = vrot.slane %v51, %v55
    %v58 = vld [vmem:[%s0] sm:$0xff]
    %v59 = vld [vmem:[%s0 + $0x8] sm:$0xff]
    %v60 = vld [vmem:[%s1] sm:$0xf]
    %v61 = vld [vmem:[%s2] sm:$0x1]
    %v63 = vlaneseq
    %v64 = vshrl.u32 %v63, 7
    %v65 = vsub.s32 0, %v64
    %v66 = vrot.slane %v61, %v65
    %vm68 = vcmask 31744
    %v70 = vsel %vm68, %v58, 0
    %v73 = vsel %vm68, %v59, 0
    %vm75 = vcmask 1043456
    %v77 = vsel %vm75, %v60, 0
    %79 = vmatprep.subr.mxu0 0.0
    %80 = vmatpush1.msra.mxu0 0.0
    %81 = vmatprep.subr.mxu0 0.0
    %82 = vmatpush1.msra.mxu0 0.0
    %83 = vmatprep.subr.mxu0 0.0
    %84 = vmatpush1.msra.mxu0 0.0
    %85 = vmatprep.subr.mxu0 0.0
    %86 = vmatpush1.msra.mxu0 0.0
    %87 = vmatprep.subr.mxu0 0.0
    %88 = vmatpush1.msra.mxu0 0.0
    %89 = vmatprep.subr.mxu0 0.0
    %90 = vmatpush1.msra.mxu0 0.0
    %91 = vmatprep.subr.mxu0 0.0
    %92 = vmatpush1.msra.mxu0 0.0
    %93 = vmatprep.subr.mxu0 0.0
    %94 = vmatpush1.msra.mxu0 0.0
    %95 = vmatprep.subr.mxu0 0.0
    %96 = vmatpush1.msra.mxu0 0.0
    %97 = vmatprep.subr.mxu0 0.0
    %98 = vmatpush1.msra.mxu0 0.0
    %99 = vmatprep.subr.mxu0 0.0
    %100 = vmatpush1.msra.mxu0 0.0
    %101 = vmatprep.subr.mxu0 0.0
    %102 = vmatpush1.msra.mxu0 0.0
    %103 = vmatprep.subr.mxu0 0.0
    %104 = vmatpush1.msra.mxu0 0.0
    %105 = vmatprep.subr.mxu0 0.0
    %106 = vmatpush1.msra.mxu0 0.0
    %107 = vmatprep.subr.mxu0 0.0
    %108 = vmatpush1.msra.mxu0 0.0
    %109 = vmatprep.subr.mxu0 0.0
    %110 = vmatpush1.msra.mxu0 %v77
    %111 = vmatprep.subr.mxu0 0.0
    %112 = vmatpush2.msra.mxu0 0.0
    %113 = vmatprep.subr.mxu0 0.0
    %114 = vmatpush2.msra.mxu0 0.0
    %115 = vmatprep.subr.mxu0 0.0
    %116 = vmatpush2.msra.mxu0 0.0
    %117 = vmatprep.subr.mxu0 0.0
    %118 = vmatpush2.msra.mxu0 0.0
    %119 = vmatprep.subr.mxu0 0.0
    %120 = vmatpush2.msra.mxu0 0.0
    %121 = vmatprep.subr.mxu0 0.0
    %122 = vmatpush2.msra.mxu0 0.0
    %123 = vmatprep.subr.mxu0 0.0
    %124 = vmatpush2.msra.mxu0 0.0
    %125 = vmatprep.subr.mxu0 0.0
    %126 = vmatpush2.msra.mxu0 0.0
    %127 = vmatprep.subr.mxu0 0.0
    %128 = vmatpush2.msra.mxu0 0.0
    %129 = vmatprep.subr.mxu0 0.0
    %130 = vmatpush2.msra.mxu0 0.0
    %131 = vmatprep.subr.mxu0 0.0
    %132 = vmatpush2.msra.mxu0 0.0
    %133 = vmatprep.subr.mxu0 0.0
    %134 = vmatpush2.msra.mxu0 0.0
    %135 = vmatprep.subr.mxu0 0.0
    %136 = vmatpush2.msra.mxu0 0.0
    %137 = vmatprep.subr.mxu0 0.0
    %138 = vmatpush2.msra.mxu0 0.0
    %139 = vmatprep.subr.mxu0 0.0
    %140 = vmatpush2.msra.mxu0 0.0
    %141 = vmatprep.subr.mxu0 0.0
    %142 = vmatpush2.msra.mxu0 0.0
    %143 = vmatprep.mubr.f32.mxu0 0.0
    %144 = vmatmul.mubr.f32.gmra.mxu0 %v70
    %v145 = vpop.f32.mrf.mxu0
    %v146 = vadd.f32 %v66, %v145
    %v147 = vpop.f32.mrf.mxu0
    %148 = vmatprep.mubr.f32.mxu0 0.0
    %149 = vmatmul.mubr.f32.gmra.mxu0 %v73
    %v150 = vpop.f32.mrf.mxu0
    %v151 = vadd.f32 %v66, %v150
    %v152 = vpop.f32.mrf.mxu0
    %153 = vdwg.mxu0
    %v154 = vxor.u32 %v146, 2147483648
    %v155 = vmul.f32 %v154, 1.442695
    %v156 = vpow.pop %v155
    %v157 = vadd.f32 %v156, 1.0
    %v158 = vrcp.pop %v157
    %v159 = vmul.f32 1.0, %v158
    %v160 = vtanh.pop %v146
    %v161 = vmul.f32 %v159, 0.0
    %163 = vrot.lane.b32.xlu0 %v160, 64
    %v164 = vpop.permute.xlu0 %163
    %v166 = vmul.f32 %v159, %v164
    %168 = vrot.lane.b32.xlu0 %v166, 32
    %v169 = vpop.permute.xlu0 %168
    %v171 = vadd.f32 %v161, %v169
    %v172 = vtanh.pop %v171
    %174 = vrot.lane.b32.xlu0 %v172, 64
    %v175 = vpop.permute.xlu0 %174
    %v177 = vmul.f32 %v159, %v175
    %179 = vrot.lane.b32.xlu0 %v177, 32
    %v180 = vpop.permute.xlu0 %179
    %vm182 = vcmask 261120
    %v183 = vsel %vm182, %v180, 0.0
    %vm184 = vcmask 523264
    %v186 = vsel %vm184, %v183, 0
    %188 = vmatprep.subr.mxu0 0.0
    %189 = vmatpush1.msra.mxu0 0.0
    %190 = vmatprep.subr.mxu0 0.0
    %191 = vmatpush1.msra.mxu0 0.0
    %192 = vmatprep.subr.mxu0 0.0
    %193 = vmatpush1.msra.mxu0 0.0
    %194 = vmatprep.subr.mxu0 0.0
    %195 = vmatpush1.msra.mxu0 0.0
    %196 = vmatprep.subr.mxu0 0.0
    %197 = vmatpush1.msra.mxu0 0.0
    %198 = vmatprep.subr.mxu0 0.0
    %199 = vmatpush1.msra.mxu0 0.0
    %200 = vmatprep.subr.mxu0 0.0
    %201 = vmatpush1.msra.mxu0 0.0
    %202 = vmatprep.subr.mxu0 0.0
    %203 = vmatpush1.msra.mxu0 0.0
    %204 = vmatprep.subr.mxu0 %v50
    %205 = vmatpush1.msra.mxu0 %v49
    %206 = vmatprep.subr.mxu0 %v48
    %207 = vmatpush1.msra.mxu0 %v47
    %208 = vmatprep.subr.mxu0 %v46
    %209 = vmatpush1.msra.mxu0 %v45
    %210 = vmatprep.subr.mxu0 %v44
    %211 = vmatpush1.msra.mxu0 %v43
    %212 = vmatprep.subr.mxu0 %v42
    %213 = vmatpush1.msra.mxu0 %v41
    %214 = vmatprep.subr.mxu0 %v40
    %215 = vmatpush1.msra.mxu0 %v39
    %216 = vmatprep.subr.mxu0 %v38
    %217 = vmatpush1.msra.mxu0 %v37
    %218 = vmatprep.subr.mxu0 %v36
    %219 = vmatpush1.msra.mxu0 %v35
    %220 = vmatprep.subr.mxu0 0.0
    %221 = vmatpush2.msra.mxu0 0.0
    %222 = vmatprep.subr.mxu0 0.0
    %223 = vmatpush2.msra.mxu0 0.0
    %224 = vmatprep.subr.mxu0 0.0
    %225 = vmatpush2.msra.mxu0 0.0
    %226 = vmatprep.subr.mxu0 0.0
    %227 = vmatpush2.msra.mxu0 0.0
    %228 = vmatprep.subr.mxu0 0.0
    %229 = vmatpush2.msra.mxu0 0.0
    %230 = vmatprep.subr.mxu0 0.0
    %231 = vmatpush2.msra.mxu0 0.0
    %232 = vmatprep.subr.mxu0 0.0
    %233 = vmatpush2.msra.mxu0 0.0
    %234 = vmatprep.subr.mxu0 0.0
    %235 = vmatpush2.msra.mxu0 0.0
    %236 = vmatprep.subr.mxu0 0.0
    %237 = vmatpush2.msra.mxu0 0.0
    %238 = vmatprep.subr.mxu0 0.0
    %239 = vmatpush2.msra.mxu0 0.0
    %240 = vmatprep.subr.mxu0 0.0
    %241 = vmatpush2.msra.mxu0 0.0
    %242 = vmatprep.subr.mxu0 0.0
    %243 = vmatpush2.msra.mxu0 0.0
    %244 = vmatprep.subr.mxu0 0.0
    %245 = vmatpush2.msra.mxu0 0.0
    %246 = vmatprep.subr.mxu0 0.0
    %247 = vmatpush2.msra.mxu0 0.0
    %248 = vmatprep.subr.mxu0 0.0
    %249 = vmatpush2.msra.mxu0 0.0
    %250 = vmatprep.subr.mxu0 0.0
    %251 = vmatpush2.msra.mxu0 0.0
    %252 = vmatprep.mubr.f32.mxu0 0.0
    %253 = vmatmul.mubr.f32.gmra.mxu0 %v186
    %v254 = vpop.f32.mrf.mxu0
    %v255 = vadd.f32 0.0, %v254
    %v256 = vpop.f32.mrf.mxu0
    %v257 = vadd.f32 0.0, %v256
    %258 = vdwg.mxu0
    %v259 = vadd.f32 %v257, %v56
    %v260 = vxor.u32 %v259, 2147483648
    %v261 = vmul.f32 %v260, 1.442695
    %v262 = vpow.pop %v261
    %v263 = vadd.f32 %v262, 1.0
    %v264 = vrcp.pop %v263
    %v265 = vmul.f32 1.0, %v264
    %v266 = vtanh.pop %v259
    %v267 = vmul.f32 %v265, 0.0
    %269 = vrot.lane.b32.xlu0 %v266, 64
    %v270 = vpop.permute.xlu0 %269
    %v272 = vmul.f32 %v265, %v270
    %274 = vrot.lane.b32.xlu0 %v272, 32
    %v275 = vpop.permute.xlu0 %274
    %v277 = vadd.f32 %v267, %v275
    %v278 = vtanh.pop %v277
    %280 = vrot.lane.b32.xlu0 %v278, 64
    %v281 = vpop.permute.xlu0 %280
    %v283 = vmul.f32 %v265, %v281
    %v285 = vrot.slane %v255, 6
    %v287 = vadd.f32 %v146, %v285
    %v288 = vxor.u32 %v287, 2147483648
    %v289 = vmul.f32 %v288, 1.442695
    %v290 = vpow.pop %v289
    %v291 = vadd.f32 %v290, 1.0
    %v292 = vrcp.pop %v291
    %v293 = vmul.f32 1.0, %v292
    %v294 = vtanh.pop %v287
    %v296 = vrot.slane %v171, 6
    %v298 = vmul.f32 %v293, %v296
    %300 = vrot.lane.b32.xlu0 %v294, 64
    %v301 = vpop.permute.xlu0 %300
    %v303 = vmul.f32 %v293, %v301
    %305 = vrot.lane.b32.xlu0 %v303, 32
    %v306 = vpop.permute.xlu0 %305
    %v308 = vadd.f32 %v298, %v306
    %v309 = vtanh.pop %v308
    %311 = vrot.lane.b32.xlu0 %v309, 64
    %v312 = vpop.permute.xlu0 %311
    %v314 = vmul.f32 %v293, %v312
    %316 = vrot.lane.b32.xlu0 %v314, 32
    %v317 = vpop.permute.xlu0 %316
    %v320 = vrot.slane %v283, 6
    %321 = vrot.lane.b32.xlu0 %v320, 64
    %v322 = vpop.permute.xlu0 %321
    %v324 = vsel %vm182, %v317, %v322
    %v326 = vrot.slane %v324, 2
    %v327 = vsel %vm184, %v326, 0
    %329 = vmatprep.subr.mxu0 0.0
    %330 = vmatpush1.msra.mxu0 0.0
    %331 = vmatprep.subr.mxu0 0.0
    %332 = vmatpush1.msra.mxu0 0.0
    %333 = vmatprep.subr.mxu0 0.0
    %334 = vmatpush1.msra.mxu0 0.0
    %335 = vmatprep.subr.mxu0 0.0
    %336 = vmatpush1.msra.mxu0 0.0
    %337 = vmatprep.subr.mxu0 0.0
    %338 = vmatpush1.msra.mxu0 0.0
    %339 = vmatprep.subr.mxu0 0.0
    %340 = vmatpush1.msra.mxu0 0.0
    %341 = vmatprep.subr.mxu0 0.0
    %342 = vmatpush1.msra.mxu0 0.0
    %343 = vmatprep.subr.mxu0 0.0
    %344 = vmatpush1.msra.mxu0 0.0
    %345 = vmatprep.subr.mxu0 %v50
    %346 = vmatpush1.msra.mxu0 %v49
    %347 = vmatprep.subr.mxu0 %v48
    %348 = vmatpush1.msra.mxu0 %v47
    %349 = vmatprep.subr.mxu0 %v46
    %350 = vmatpush1.msra.mxu0 %v45
    %351 = vmatprep.subr.mxu0 %v44
    %352 = vmatpush1.msra.mxu0 %v43
    %353 = vmatprep.subr.mxu0 %v42
    %354 = vmatpush1.msra.mxu0 %v41
    %355 = vmatprep.subr.mxu0 %v40
    %356 = vmatpush1.msra.mxu0 %v39
    %357 = vmatprep.subr.mxu0 %v38
    %358 = vmatpush1.msra.mxu0 %v37
    %359 = vmatprep.subr.mxu0 %v36
    %360 = vmatpush1.msra.mxu0 %v35
    %361 = vmatprep.subr.mxu0 0.0
    %362 = vmatpush2.msra.mxu0 0.0
    %363 = vmatprep.subr.mxu0 0.0
    %364 = vmatpush2.msra.mxu0 0.0
    %365 = vmatprep.subr.mxu0 0.0
    %366 = vmatpush2.msra.mxu0 0.0
    %367 = vmatprep.subr.mxu0 0.0
    %368 = vmatpush2.msra.mxu0 0.0
    %369 = vmatprep.subr.mxu0 0.0
    %370 = vmatpush2.msra.mxu0 0.0
    %371 = vmatprep.subr.mxu0 0.0
    %372 = vmatpush2.msra.mxu0 0.0
    %373 = vmatprep.subr.mxu0 0.0
    %374 = vmatpush2.msra.mxu0 0.0
    %375 = vmatprep.subr.mxu0 0.0
    %376 = vmatpush2.msra.mxu0 0.0
    %377 = vmatprep.subr.mxu0 0.0
    %378 = vmatpush2.msra.mxu0 0.0
    %379 = vmatprep.subr.mxu0 0.0
    %380 = vmatpush2.msra.mxu0 0.0
    %381 = vmatprep.subr.mxu0 0.0
    %382 = vmatpush2.msra.mxu0 0.0
    %383 = vmatprep.subr.mxu0 0.0
    %384 = vmatpush2.msra.mxu0 0.0
    %385 = vmatprep.subr.mxu0 0.0
    %386 = vmatpush2.msra.mxu0 0.0
    %387 = vmatprep.subr.mxu0 0.0
    %388 = vmatpush2.msra.mxu0 0.0
    %389 = vmatprep.subr.mxu0 0.0
    %390 = vmatpush2.msra.mxu0 0.0
    %391 = vmatprep.subr.mxu0 0.0
    %392 = vmatpush2.msra.mxu0 0.0
    %393 = vmatprep.mubr.f32.mxu0 0.0
    %394 = vmatmul.mubr.f32.gmra.mxu0 %v327
    %v395 = vpop.f32.mrf.mxu0
    %v396 = vadd.f32 0.0, %v395
    %v397 = vpop.f32.mrf.mxu0
    %v398 = vadd.f32 0.0, %v397
    %399 = vdwg.mxu0
    %v400 = vadd.f32 %v398, %v56
    %v401 = vxor.u32 %v400, 2147483648
    %v402 = vmul.f32 %v401, 1.442695
    %v403 = vpow.pop %v402
    %v404 = vadd.f32 %v403, 1.0
    %v405 = vrcp.pop %v404
    %v406 = vmul.f32 1.0, %v405
    %v407 = vtanh.pop %v400
    %v408 = vmul.f32 %v406, %v277
    %410 = vrot.lane.b32.xlu0 %v407, 64
    %v411 = vpop.permute.xlu0 %410
    %v413 = vmul.f32 %v406, %v411
    %415 = vrot.lane.b32.xlu0 %v413, 32
    %v416 = vpop.permute.xlu0 %415
    %v418 = vadd.f32 %v408, %v416
    %v419 = vtanh.pop %v418
    %421 = vrot.lane.b32.xlu0 %v419, 64
    %v422 = vpop.permute.xlu0 %421
    %v424 = vmul.f32 %v406, %v422
    %v426 = vrot.slane %v396, 4
    %v428 = vadd.f32 %v146, %v426
    %v429 = vxor.u32 %v428, 2147483648
    %v430 = vmul.f32 %v429, 1.442695
    %v431 = vpow.pop %v430
    %v432 = vadd.f32 %v431, 1.0
    %v433 = vrcp.pop %v432
    %v434 = vmul.f32 1.0, %v433
    %v435 = vtanh.pop %v428
    %v437 = vrot.slane %v308, 6
    %v439 = vmul.f32 %v434, %v437
    %441 = vrot.lane.b32.xlu0 %v435, 64
    %v442 = vpop.permute.xlu0 %441
    %v444 = vmul.f32 %v434, %v442
    %446 = vrot.lane.b32.xlu0 %v444, 32
    %v447 = vpop.permute.xlu0 %446
    %v449 = vadd.f32 %v439, %v447
    %v450 = vtanh.pop %v449
    %452 = vrot.lane.b32.xlu0 %v450, 64
    %v453 = vpop.permute.xlu0 %452
    %v455 = vmul.f32 %v434, %v453
    %457 = vrot.lane.b32.xlu0 %v455, 32
    %v458 = vpop.permute.xlu0 %457
    %v461 = vrot.slane %v424, 4
    %462 = vrot.lane.b32.xlu0 %v461, 64
    %v463 = vpop.permute.xlu0 %462
    %v465 = vsel %vm182, %v458, %v463
    %v467 = vrot.slane %v465, 4
    %v468 = vsel %vm184, %v467, 0
    %470 = vmatprep.subr.mxu0 0.0
    %471 = vmatpush1.msra.mxu0 0.0
    %472 = vmatprep.subr.mxu0 0.0
    %473 = vmatpush1.msra.mxu0 0.0
    %474 = vmatprep.subr.mxu0 0.0
    %475 = vmatpush1.msra.mxu0 0.0
    %476 = vmatprep.subr.mxu0 0.0
    %477 = vmatpush1.msra.mxu0 0.0
    %478 = vmatprep.subr.mxu0 0.0
    %479 = vmatpush1.msra.mxu0 0.0
    %480 = vmatprep.subr.mxu0 0.0
    %481 = vmatpush1.msra.mxu0 0.0
    %482 = vmatprep.subr.mxu0 0.0
    %483 = vmatpush1.msra.mxu0 0.0
    %484 = vmatprep.subr.mxu0 0.0
    %485 = vmatpush1.msra.mxu0 0.0
    %486 = vmatprep.subr.mxu0 %v50
    %487 = vmatpush1.msra.mxu0 %v49
    %488 = vmatprep.subr.mxu0 %v48
    %489 = vmatpush1.msra.mxu0 %v47
    %490 = vmatprep.subr.mxu0 %v46
    %491 = vmatpush1.msra.mxu0 %v45
    %492 = vmatprep.subr.mxu0 %v44
    %493 = vmatpush1.msra.mxu0 %v43
    %494 = vmatprep.subr.mxu0 %v42
    %495 = vmatpush1.msra.mxu0 %v41
    %496 = vmatprep.subr.mxu0 %v40
    %497 = vmatpush1.msra.mxu0 %v39
    %498 = vmatprep.subr.mxu0 %v38
    %499 = vmatpush1.msra.mxu0 %v37
    %500 = vmatprep.subr.mxu0 %v36
    %501 = vmatpush1.msra.mxu0 %v35
    %502 = vmatprep.subr.mxu0 0.0
    %503 = vmatpush2.msra.mxu0 0.0
    %504 = vmatprep.subr.mxu0 0.0
    %505 = vmatpush2.msra.mxu0 0.0
    %506 = vmatprep.subr.mxu0 0.0
    %507 = vmatpush2.msra.mxu0 0.0
    %508 = vmatprep.subr.mxu0 0.0
    %509 = vmatpush2.msra.mxu0 0.0
    %510 = vmatprep.subr.mxu0 0.0
    %511 = vmatpush2.msra.mxu0 0.0
    %512 = vmatprep.subr.mxu0 0.0
    %513 = vmatpush2.msra.mxu0 0.0
    %514 = vmatprep.subr.mxu0 0.0
    %515 = vmatpush2.msra.mxu0 0.0
    %516 = vmatprep.subr.mxu0 0.0
    %517 = vmatpush2.msra.mxu0 0.0
    %518 = vmatprep.subr.mxu0 0.0
    %519 = vmatpush2.msra.mxu0 0.0
    %520 = vmatprep.subr.mxu0 0.0
    %521 = vmatpush2.msra.mxu0 0.0
    %522 = vmatprep.subr.mxu0 0.0
    %523 = vmatpush2.msra.mxu0 0.0
    %524 = vmatprep.subr.mxu0 0.0
    %525 = vmatpush2.msra.mxu0 0.0
    %526 = vmatprep.subr.mxu0 0.0
    %527 = vmatpush2.msra.mxu0 0.0
    %528 = vmatprep.subr.mxu0 0.0
    %529 = vmatpush2.msra.mxu0 0.0
    %530 = vmatprep.subr.mxu0 0.0
    %531 = vmatpush2.msra.mxu0 0.0
    %532 = vmatprep.subr.mxu0 0.0
    %533 = vmatpush2.msra.mxu0 0.0
    %534 = vmatprep.mubr.f32.mxu0 0.0
    %535 = vmatmul.mubr.f32.gmra.mxu0 %v468
    %v536 = vpop.f32.mrf.mxu0
    %v537 = vadd.f32 0.0, %v536
    %v538 = vpop.f32.mrf.mxu0
    %v539 = vadd.f32 0.0, %v538
    %540 = vdwg.mxu0
    %v541 = vadd.f32 %v539, %v56
    %v542 = vxor.u32 %v541, 2147483648
    %v543 = vmul.f32 %v542, 1.442695
    %v544 = vpow.pop %v543
    %v545 = vadd.f32 %v544, 1.0
    %v546 = vrcp.pop %v545
    %v547 = vmul.f32 1.0, %v546
    %v548 = vtanh.pop %v541
    %v549 = vmul.f32 %v547, %v418
    %551 = vrot.lane.b32.xlu0 %v548, 64
    %v552 = vpop.permute.xlu0 %551
    %v554 = vmul.f32 %v547, %v552
    %556 = vrot.lane.b32.xlu0 %v554, 32
    %v557 = vpop.permute.xlu0 %556
    %v559 = vadd.f32 %v549, %v557
    %v560 = vtanh.pop %v559
    %562 = vrot.lane.b32.xlu0 %v560, 64
    %v563 = vpop.permute.xlu0 %562
    %v565 = vmul.f32 %v547, %v563
    %v567 = vrot.slane %v537, 2
    %v569 = vadd.f32 %v146, %v567
    %v570 = vxor.u32 %v569, 2147483648
    %v571 = vmul.f32 %v570, 1.442695
    %v572 = vpow.pop %v571
    %v573 = vadd.f32 %v572, 1.0
    %v574 = vrcp.pop %v573
    %v575 = vmul.f32 1.0, %v574
    %v576 = vtanh.pop %v569
    %v578 = vrot.slane %v449, 6
    %v580 = vmul.f32 %v575, %v578
    %582 = vrot.lane.b32.xlu0 %v576, 64
    %v583 = vpop.permute.xlu0 %582
    %v585 = vmul.f32 %v575, %v583
    %587 = vrot.lane.b32.xlu0 %v585, 32
    %v588 = vpop.permute.xlu0 %587
    %v590 = vadd.f32 %v580, %v588
    %v591 = vtanh.pop %v590
    %593 = vrot.lane.b32.xlu0 %v591, 64
    %v594 = vpop.permute.xlu0 %593
    %v596 = vmul.f32 %v575, %v594
    %598 = vrot.lane.b32.xlu0 %v596, 32
    %v599 = vpop.permute.xlu0 %598
    %v602 = vrot.slane %v565, 2
    %603 = vrot.lane.b32.xlu0 %v602, 64
    %v604 = vpop.permute.xlu0 %603
    %v606 = vsel %vm182, %v599, %v604
    %v608 = vrot.slane %v606, 6
    %v609 = vsel %vm184, %v608, 0
    %611 = vmatprep.subr.mxu0 0.0
    %612 = vmatpush1.msra.mxu0 0.0
    %613 = vmatprep.subr.mxu0 0.0
    %614 = vmatpush1.msra.mxu0 0.0
    %615 = vmatprep.subr.mxu0 0.0
    %616 = vmatpush1.msra.mxu0 0.0
    %617 = vmatprep.subr.mxu0 0.0
    %618 = vmatpush1.msra.mxu0 0.0
    %619 = vmatprep.subr.mxu0 0.0
    %620 = vmatpush1.msra.mxu0 0.0
    %621 = vmatprep.subr.mxu0 0.0
    %622 = vmatpush1.msra.mxu0 0.0
    %623 = vmatprep.subr.mxu0 0.0
    %624 = vmatpush1.msra.mxu0 0.0
    %625 = vmatprep.subr.mxu0 0.0
    %626 = vmatpush1.msra.mxu0 0.0
    %627 = vmatprep.subr.mxu0 %v50
    %628 = vmatpush1.msra.mxu0 %v49
    %629 = vmatprep.subr.mxu0 %v48
    %630 = vmatpush1.msra.mxu0 %v47
    %631 = vmatprep.subr.mxu0 %v46
    %632 = vmatpush1.msra.mxu0 %v45
    %633 = vmatprep.subr.mxu0 %v44
    %634 = vmatpush1.msra.mxu0 %v43
    %635 = vmatprep.subr.mxu0 %v42
    %636 = vmatpush1.msra.mxu0 %v41
    %637 = vmatprep.subr.mxu0 %v40
    %638 = vmatpush1.msra.mxu0 %v39
    %639 = vmatprep.subr.mxu0 %v38
    %640 = vmatpush1.msra.mxu0 %v37
    %641 = vmatprep.subr.mxu0 %v36
    %642 = vmatpush1.msra.mxu0 %v35
    %643 = vmatprep.subr.mxu0 0.0
    %644 = vmatpush2.msra.mxu0 0.0
    %645 = vmatprep.subr.mxu0 0.0
    %646 = vmatpush2.msra.mxu0 0.0
    %647 = vmatprep.subr.mxu0 0.0
    %648 = vmatpush2.msra.mxu0 0.0
    %649 = vmatprep.subr.mxu0 0.0
    %650 = vmatpush2.msra.mxu0 0.0
    %651 = vmatprep.subr.mxu0 0.0
    %652 = vmatpush2.msra.mxu0 0.0
    %653 = vmatprep.subr.mxu0 0.0
    %654 = vmatpush2.msra.mxu0 0.0
    %655 = vmatprep.subr.mxu0 0.0
    %656 = vmatpush2.msra.mxu0 0.0
    %657 = vmatprep.subr.mxu0 0.0
    %658 = vmatpush2.msra.mxu0 0.0
    %659 = vmatprep.subr.mxu0 0.0
    %660 = vmatpush2.msra.mxu0 0.0
    %661 = vmatprep.subr.mxu0 0.0
    %662 = vmatpush2.msra.mxu0 0.0
    %663 = vmatprep.subr.mxu0 0.0
    %664 = vmatpush2.msra.mxu0 0.0
    %665 = vmatprep.subr.mxu0 0.0
    %666 = vmatpush2.msra.mxu0 0.0
    %667 = vmatprep.subr.mxu0 0.0
    %668 = vmatpush2.msra.mxu0 0.0
    %669 = vmatprep.subr.mxu0 0.0
    %670 = vmatpush2.msra.mxu0 0.0
    %671 = vmatprep.subr.mxu0 0.0
    %672 = vmatpush2.msra.mxu0 0.0
    %673 = vmatprep.subr.mxu0 0.0
    %674 = vmatpush2.msra.mxu0 0.0
    %675 = vmatprep.mubr.f32.mxu0 0.0
    %676 = vmatmul.mubr.f32.gmra.mxu0 %v609
    %v677 = vpop.f32.mrf.mxu0
    %v678 = vadd.f32 0.0, %v677
    %v679 = vpop.f32.mrf.mxu0
    %v680 = vadd.f32 0.0, %v679
    %681 = vdwg.mxu0
    %v682 = vadd.f32 %v680, %v56
    %v683 = vxor.u32 %v682, 2147483648
    %v684 = vmul.f32 %v683, 1.442695
    %v685 = vpow.pop %v684
    %v686 = vadd.f32 %v685, 1.0
    %v687 = vrcp.pop %v686
    %v688 = vmul.f32 1.0, %v687
    %v689 = vtanh.pop %v682
    %v690 = vmul.f32 %v688, %v559
    %692 = vrot.lane.b32.xlu0 %v689, 64
    %v693 = vpop.permute.xlu0 %692
    %v695 = vmul.f32 %v688, %v693
    %697 = vrot.lane.b32.xlu0 %v695, 32
    %v698 = vpop.permute.xlu0 %697
    %v700 = vadd.f32 %v690, %v698
    %v701 = vtanh.pop %v700
    %703 = vrot.lane.b32.xlu0 %v701, 64
    %v704 = vpop.permute.xlu0 %703
    %v706 = vmul.f32 %v688, %v704
    %v707 = vadd.f32 %v151, %v678
    %v708 = vxor.u32 %v707, 2147483648
    %v709 = vmul.f32 %v708, 1.442695
    %v710 = vpow.pop %v709
    %v711 = vadd.f32 %v710, 1.0
    %v712 = vrcp.pop %v711
    %v713 = vmul.f32 1.0, %v712
    %v714 = vtanh.pop %v707
    %v716 = vrot.slane %v590, 6
    %v718 = vmul.f32 %v713, %v716
    %720 = vrot.lane.b32.xlu0 %v714, 64
    %v721 = vpop.permute.xlu0 %720
    %v723 = vmul.f32 %v713, %v721
    %725 = vrot.lane.b32.xlu0 %v723, 32
    %v726 = vpop.permute.xlu0 %725
    %v728 = vadd.f32 %v718, %v726
    %v729 = vtanh.pop %v728
    %731 = vrot.lane.b32.xlu0 %v729, 64
    %v732 = vpop.permute.xlu0 %731
    %v734 = vmul.f32 %v713, %v732
    %736 = vrot.lane.b32.xlu0 %v734, 32
    %v737 = vpop.permute.xlu0 %736
    %740 = vrot.lane.b32.xlu0 %v706, 64
    %v741 = vpop.permute.xlu0 %740
    %v743 = vsel %vm182, %v737, %v741
    %v745 = vsel %vm184, %v743, 0
    %747 = vmatprep.subr.mxu0 0.0
    %748 = vmatpush1.msra.mxu0 0.0
    %749 = vmatprep.subr.mxu0 0.0
    %750 = vmatpush1.msra.mxu0 0.0
    %751 = vmatprep.subr.mxu0 0.0
    %752 = vmatpush1.msra.mxu0 0.0
    %753 = vmatprep.subr.mxu0 0.0
    %754 = vmatpush1.msra.mxu0 0.0
    %755 = vmatprep.subr.mxu0 0.0
    %756 = vmatpush1.msra.mxu0 0.0
    %757 = vmatprep.subr.mxu0 0.0
    %758 = vmatpush1.msra.mxu0 0.0
    %759 = vmatprep.subr.mxu0 0.0
    %760 = vmatpush1.msra.mxu0 0.0
    %761 = vmatprep.subr.mxu0 0.0
    %762 = vmatpush1.msra.mxu0 0.0
    %763 = vmatprep.subr.mxu0 %v50
    %764 = vmatpush1.msra.mxu0 %v49
    %765 = vmatprep.subr.mxu0 %v48
    %766 = vmatpush1.msra.mxu0 %v47
    %767 = vmatprep.subr.mxu0 %v46
    %768 = vmatpush1.msra.mxu0 %v45
    %769 = vmatprep.subr.mxu0 %v44
    %770 = vmatpush1.msra.mxu0 %v43
    %771 = vmatprep.subr.mxu0 %v42
    %772 = vmatpush1.msra.mxu0 %v41
    %773 = vmatprep.subr.mxu0 %v40
    %774 = vmatpush1.msra.mxu0 %v39
    %775 = vmatprep.subr.mxu0 %v38
    %776 = vmatpush1.msra.mxu0 %v37
    %777 = vmatprep.subr.mxu0 %v36
    %778 = vmatpush1.msra.mxu0 %v35
    %779 = vmatprep.subr.mxu0 0.0
    %780 = vmatpush2.msra.mxu0 0.0
    %781 = vmatprep.subr.mxu0 0.0
    %782 = vmatpush2.msra.mxu0 0.0
    %783 = vmatprep.subr.mxu0 0.0
    %784 = vmatpush2.msra.mxu0 0.0
    %785 = vmatprep.subr.mxu0 0.0
    %786 = vmatpush2.msra.mxu0 0.0
    %787 = vmatprep.subr.mxu0 0.0
    %788 = vmatpush2.msra.mxu0 0.0
    %789 = vmatprep.subr.mxu0 0.0
    %790 = vmatpush2.msra.mxu0 0.0
    %791 = vmatprep.subr.mxu0 0.0
    %792 = vmatpush2.msra.mxu0 0.0
    %793 = vmatprep.subr.mxu0 0.0
    %794 = vmatpush2.msra.mxu0 0.0
    %795 = vmatprep.subr.mxu0 0.0
    %796 = vmatpush2.msra.mxu0 0.0
    %797 = vmatprep.subr.mxu0 0.0
    %798 = vmatpush2.msra.mxu0 0.0
    %799 = vmatprep.subr.mxu0 0.0
    %800 = vmatpush2.msra.mxu0 0.0
    %801 = vmatprep.subr.mxu0 0.0
    %802 = vmatpush2.msra.mxu0 0.0
    %803 = vmatprep.subr.mxu0 0.0
    %804 = vmatpush2.msra.mxu0 0.0
    %805 = vmatprep.subr.mxu0 0.0
    %806 = vmatpush2.msra.mxu0 0.0
    %807 = vmatprep.subr.mxu0 0.0
    %808 = vmatpush2.msra.mxu0 0.0
    %809 = vmatprep.subr.mxu0 0.0
    %810 = vmatpush2.msra.mxu0 0.0
    %811 = vmatprep.mubr.f32.mxu0 0.0
    %812 = vmatmul.mubr.f32.gmra.mxu0 %v745
    %v813 = vpop.f32.mrf.mxu0
    %v814 = vadd.f32 0.0, %v813
    %v815 = vpop.f32.mrf.mxu0
    %v816 = vadd.f32 0.0, %v815
    %817 = vdwg.mxu0
    %v818 = vadd.f32 %v816, %v56
    %v819 = vxor.u32 %v818, 2147483648
    %v820 = vmul.f32 %v819, 1.442695
    %v821 = vpow.pop %v820
    %v822 = vadd.f32 %v821, 1.0
    %v823 = vrcp.pop %v822
    %v824 = vmul.f32 1.0, %v823
    %v825 = vtanh.pop %v818
    %v826 = vmul.f32 %v824, %v700
    %828 = vrot.lane.b32.xlu0 %v825, 64
    %v829 = vpop.permute.xlu0 %828
    %v831 = vmul.f32 %v824, %v829
    %833 = vrot.lane.b32.xlu0 %v831, 32
    %v834 = vpop.permute.xlu0 %833
    %v836 = vadd.f32 %v826, %v834
    %v837 = vtanh.pop %v836
    %839 = vrot.lane.b32.xlu0 %v837, 64
    %v840 = vpop.permute.xlu0 %839
    %v842 = vmul.f32 %v824, %v840
    %v844 = vrot.slane %v814, 6
    %v846 = vadd.f32 %v151, %v844
    %v847 = vxor.u32 %v846, 2147483648
    %v848 = vmul.f32 %v847, 1.442695
    %v849 = vpow.pop %v848
    %v850 = vadd.f32 %v849, 1.0
    %v851 = vrcp.pop %v850
    %v852 = vmul.f32 1.0, %v851
    %v853 = vtanh.pop %v846
    %v855 = vrot.slane %v728, 6
    %v857 = vmul.f32 %v852, %v855
    %859 = vrot.lane.b32.xlu0 %v853, 64
    %v860 = vpop.permute.xlu0 %859
    %v862 = vmul.f32 %v852, %v860
    %864 = vrot.lane.b32.xlu0 %v862, 32
    %v865 = vpop.permute.xlu0 %864
    %v867 = vadd.f32 %v857, %v865
    %v868 = vtanh.pop %v867
    %870 = vrot.lane.b32.xlu0 %v868, 64
    %v871 = vpop.permute.xlu0 %870
    %v873 = vmul.f32 %v852, %v871
    %875 = vrot.lane.b32.xlu0 %v873, 32
    %v876 = vpop.permute.xlu0 %875
    %v879 = vrot.slane %v842, 6
    %880 = vrot.lane.b32.xlu0 %v879, 64
    %v881 = vpop.permute.xlu0 %880
    %v883 = vsel %vm182, %v876, %v881
    %v885 = vrot.slane %v883, 2
    %v886 = vsel %vm184, %v885, 0
    %888 = vmatprep.subr.mxu0 0.0
    %889 = vmatpush1.msra.mxu0 0.0
    %890 = vmatprep.subr.mxu0 0.0
    %891 = vmatpush1.msra.mxu0 0.0
    %892 = vmatprep.subr.mxu0 0.0
    %893 = vmatpush1.msra.mxu0 0.0
    %894 = vmatprep.subr.mxu0 0.0
    %895 = vmatpush1.msra.mxu0 0.0
    %896 = vmatprep.subr.mxu0 0.0
    %897 = vmatpush1.msra.mxu0 0.0
    %898 = vmatprep.subr.mxu0 0.0
    %899 = vmatpush1.msra.mxu0 0.0
    %900 = vmatprep.subr.mxu0 0.0
    %901 = vmatpush1.msra.mxu0 0.0
    %902 = vmatprep.subr.mxu0 0.0
    %903 = vmatpush1.msra.mxu0 0.0
    %904 = vmatprep.subr.mxu0 %v50
    %905 = vmatpush1.msra.mxu0 %v49
    %906 = vmatprep.subr.mxu0 %v48
    %907 = vmatpush1.msra.mxu0 %v47
    %908 = vmatprep.subr.mxu0 %v46
    %909 = vmatpush1.msra.mxu0 %v45
    %910 = vmatprep.subr.mxu0 %v44
    %911 = vmatpush1.msra.mxu0 %v43
    %912 = vmatprep.subr.mxu0 %v42
    %913 = vmatpush1.msra.mxu0 %v41
    %914 = vmatprep.subr.mxu0 %v40
    %915 = vmatpush1.msra.mxu0 %v39
    %916 = vmatprep.subr.mxu0 %v38
    %917 = vmatpush1.msra.mxu0 %v37
    %918 = vmatprep.subr.mxu0 %v36
    %919 = vmatpush1.msra.mxu0 %v35
    %920 = vmatprep.subr.mxu0 0.0
    %921 = vmatpush2.msra.mxu0 0.0
    %922 = vmatprep.subr.mxu0 0.0
    %923 = vmatpush2.msra.mxu0 0.0
    %924 = vmatprep.subr.mxu0 0.0
    %925 = vmatpush2.msra.mxu0 0.0
    %926 = vmatprep.subr.mxu0 0.0
    %927 = vmatpush2.msra.mxu0 0.0
    %928 = vmatprep.subr.mxu0 0.0
    %929 = vmatpush2.msra.mxu0 0.0
    %930 = vmatprep.subr.mxu0 0.0
    %931 = vmatpush2.msra.mxu0 0.0
    %932 = vmatprep.subr.mxu0 0.0
    %933 = vmatpush2.msra.mxu0 0.0
    %934 = vmatprep.subr.mxu0 0.0
    %935 = vmatpush2.msra.mxu0 0.0
    %936 = vmatprep.subr.mxu0 0.0
    %937 = vmatpush2.msra.mxu0 0.0
    %938 = vmatprep.subr.mxu0 0.0
    %939 = vmatpush2.msra.mxu0 0.0
    %940 = vmatprep.subr.mxu0 0.0
    %941 = vmatpush2.msra.mxu0 0.0
    %942 = vmatprep.subr.mxu0 0.0
    %943 = vmatpush2.msra.mxu0 0.0
    %944 = vmatprep.subr.mxu0 0.0
    %945 = vmatpush2.msra.mxu0 0.0
    %946 = vmatprep.subr.mxu0 0.0
    %947 = vmatpush2.msra.mxu0 0.0
    %948 = vmatprep.subr.mxu0 0.0
    %949 = vmatpush2.msra.mxu0 0.0
    %950 = vmatprep.subr.mxu0 0.0
    %951 = vmatpush2.msra.mxu0 0.0
    %952 = vmatprep.mubr.f32.mxu0 0.0
    %953 = vmatmul.mubr.f32.gmra.mxu0 %v886
    %v954 = vpop.f32.mrf.mxu0
    %v955 = vadd.f32 0.0, %v954
    %v956 = vpop.f32.mrf.mxu0
    %v957 = vadd.f32 0.0, %v956
    %958 = vdwg.mxu0
    %v959 = vadd.f32 %v957, %v56
    %v960 = vxor.u32 %v959, 2147483648
    %v961 = vmul.f32 %v960, 1.442695
    %v962 = vpow.pop %v961
    %v963 = vadd.f32 %v962, 1.0
    %v964 = vrcp.pop %v963
    %v965 = vmul.f32 1.0, %v964
    %v966 = vtanh.pop %v959
    %v967 = vmul.f32 %v965, %v836
    %969 = vrot.lane.b32.xlu0 %v966, 64
    %v970 = vpop.permute.xlu0 %969
    %v972 = vmul.f32 %v965, %v970
    %974 = vrot.lane.b32.xlu0 %v972, 32
    %v975 = vpop.permute.xlu0 %974
    %v977 = vadd.f32 %v967, %v975
    %v978 = vtanh.pop %v977
    %980 = vrot.lane.b32.xlu0 %v978, 64
    %v981 = vpop.permute.xlu0 %980
    %v983 = vmul.f32 %v965, %v981
    %v985 = vrot.slane %v955, 4
    %v987 = vadd.f32 %v151, %v985
    %v988 = vxor.u32 %v987, 2147483648
    %v989 = vmul.f32 %v988, 1.442695
    %v990 = vpow.pop %v989
    %v991 = vadd.f32 %v990, 1.0
    %v992 = vrcp.pop %v991
    %v993 = vmul.f32 1.0, %v992
    %v994 = vtanh.pop %v987
    %v996 = vrot.slane %v867, 6
    %v998 = vmul.f32 %v993, %v996
    %1000 = vrot.lane.b32.xlu0 %v994, 64
    %v1001 = vpop.permute.xlu0 %1000
    %v1003 = vmul.f32 %v993, %v1001
    %1005 = vrot.lane.b32.xlu0 %v1003, 32
    %v1006 = vpop.permute.xlu0 %1005
    %v1008 = vadd.f32 %v998, %v1006
    %v1009 = vtanh.pop %v1008
    %1011 = vrot.lane.b32.xlu0 %v1009, 64
    %v1012 = vpop.permute.xlu0 %1011
    %v1014 = vmul.f32 %v993, %v1012
    %1016 = vrot.lane.b32.xlu0 %v1014, 32
    %v1017 = vpop.permute.xlu0 %1016
    %v1020 = vrot.slane %v983, 4
    %1021 = vrot.lane.b32.xlu0 %v1020, 64
    %v1022 = vpop.permute.xlu0 %1021
    %v1024 = vsel %vm182, %v1017, %v1022
    %v1026 = vrot.slane %v1024, 4
    %v1027 = vsel %vm184, %v1026, 0
    %1029 = vmatprep.subr.mxu0 0.0
    %1030 = vmatpush1.msra.mxu0 0.0
    %1031 = vmatprep.subr.mxu0 0.0
    %1032 = vmatpush1.msra.mxu0 0.0
    %1033 = vmatprep.subr.mxu0 0.0
    %1034 = vmatpush1.msra.mxu0 0.0
    %1035 = vmatprep.subr.mxu0 0.0
    %1036 = vmatpush1.msra.mxu0 0.0
    %1037 = vmatprep.subr.mxu0 0.0
    %1038 = vmatpush1.msra.mxu0 0.0
    %1039 = vmatprep.subr.mxu0 0.0
    %1040 = vmatpush1.msra.mxu0 0.0
    %1041 = vmatprep.subr.mxu0 0.0
    %1042 = vmatpush1.msra.mxu0 0.0
    %1043 = vmatprep.subr.mxu0 0.0
    %1044 = vmatpush1.msra.mxu0 0.0
    %1045 = vmatprep.subr.mxu0 %v50
    %1046 = vmatpush1.msra.mxu0 %v49
    %1047 = vmatprep.subr.mxu0 %v48
    %1048 = vmatpush1.msra.mxu0 %v47
    %1049 = vmatprep.subr.mxu0 %v46
    %1050 = vmatpush1.msra.mxu0 %v45
    %1051 = vmatprep.subr.mxu0 %v44
    %1052 = vmatpush1.msra.mxu0 %v43
    %1053 = vmatprep.subr.mxu0 %v42
    %1054 = vmatpush1.msra.mxu0 %v41
    %1055 = vmatprep.subr.mxu0 %v40
    %1056 = vmatpush1.msra.mxu0 %v39
    %1057 = vmatprep.subr.mxu0 %v38
    %1058 = vmatpush1.msra.mxu0 %v37
    %1059 = vmatprep.subr.mxu0 %v36
    %1060 = vmatpush1.msra.mxu0 %v35
    %1061 = vmatprep.subr.mxu0 0.0
    %1062 = vmatpush2.msra.mxu0 0.0
    %1063 = vmatprep.subr.mxu0 0.0
    %1064 = vmatpush2.msra.mxu0 0.0
    %1065 = vmatprep.subr.mxu0 0.0
    %1066 = vmatpush2.msra.mxu0 0.0
    %1067 = vmatprep.subr.mxu0 0.0
    %1068 = vmatpush2.msra.mxu0 0.0
    %1069 = vmatprep.subr.mxu0 0.0
    %1070 = vmatpush2.msra.mxu0 0.0
    %1071 = vmatprep.subr.mxu0 0.0
    %1072 = vmatpush2.msra.mxu0 0.0
    %1073 = vmatprep.subr.mxu0 0.0
    %1074 = vmatpush2.msra.mxu0 0.0
    %1075 = vmatprep.subr.mxu0 0.0
    %1076 = vmatpush2.msra.mxu0 0.0
    %1077 = vmatprep.subr.mxu0 0.0
    %1078 = vmatpush2.msra.mxu0 0.0
    %1079 = vmatprep.subr.mxu0 0.0
    %1080 = vmatpush2.msra.mxu0 0.0
    %1081 = vmatprep.subr.mxu0 0.0
    %1082 = vmatpush2.msra.mxu0 0.0
    %1083 = vmatprep.subr.mxu0 0.0
    %1084 = vmatpush2.msra.mxu0 0.0
    %1085 = vmatprep.subr.mxu0 0.0
    %1086 = vmatpush2.msra.mxu0 0.0
    %1087 = vmatprep.subr.mxu0 0.0
    %1088 = vmatpush2.msra.mxu0 0.0
    %1089 = vmatprep.subr.mxu0 0.0
    %1090 = vmatpush2.msra.mxu0 0.0
    %1091 = vmatprep.subr.mxu0 0.0
    %1092 = vmatpush2.msra.mxu0 0.0
    %1093 = vmatprep.mubr.f32.mxu0 0.0
    %1094 = vmatmul.mubr.f32.gmra.mxu0 %v1027
    %v1095 = vpop.f32.mrf.mxu0
    %v1096 = vadd.f32 0.0, %v1095
    %v1097 = vpop.f32.mrf.mxu0
    %v1098 = vadd.f32 0.0, %v1097
    %1099 = vdwg.mxu0
    %v1100 = vadd.f32 %v1098, %v56
    %v1101 = vxor.u32 %v1100, 2147483648
    %v1102 = vmul.f32 %v1101, 1.442695
    %v1103 = vpow.pop %v1102
    %v1104 = vadd.f32 %v1103, 1.0
    %v1105 = vrcp.pop %v1104
    %v1106 = vmul.f32 1.0, %v1105
    %v1107 = vtanh.pop %v1100
    %v1108 = vmul.f32 %v1106, %v977
    %1110 = vrot.lane.b32.xlu0 %v1107, 64
    %v1111 = vpop.permute.xlu0 %1110
    %v1113 = vmul.f32 %v1106, %v1111
    %1115 = vrot.lane.b32.xlu0 %v1113, 32
    %v1116 = vpop.permute.xlu0 %1115
    %v1118 = vadd.f32 %v1108, %v1116
    %v1119 = vtanh.pop %v1118
    %1121 = vrot.lane.b32.xlu0 %v1119, 64
    %v1122 = vpop.permute.xlu0 %1121
    %v1124 = vmul.f32 %v1106, %v1122
    %v1126 = vrot.slane %v1096, 2
    %v1128 = vadd.f32 %v151, %v1126
    %v1129 = vxor.u32 %v1128, 2147483648
    %v1130 = vmul.f32 %v1129, 1.442695
    %v1131 = vpow.pop %v1130
    %v1132 = vadd.f32 %v1131, 1.0
    %v1133 = vrcp.pop %v1132
    %v1134 = vmul.f32 1.0, %v1133
    %v1135 = vtanh.pop %v1128
    %v1137 = vrot.slane %v1008, 6
    %v1139 = vmul.f32 %v1134, %v1137
    %1141 = vrot.lane.b32.xlu0 %v1135, 64
    %v1142 = vpop.permute.xlu0 %1141
    %v1144 = vmul.f32 %v1134, %v1142
    %1146 = vrot.lane.b32.xlu0 %v1144, 32
    %v1147 = vpop.permute.xlu0 %1146
    %v1149 = vadd.f32 %v1139, %v1147
    %v1150 = vtanh.pop %v1149
    %1152 = vrot.lane.b32.xlu0 %v1150, 64
    %v1153 = vpop.permute.xlu0 %1152
    %v1155 = vmul.f32 %v1134, %v1153
    %1157 = vrot.lane.b32.xlu0 %v1155, 32
    %v1158 = vpop.permute.xlu0 %1157
    %v1161 = vrot.slane %v1124, 2
    %1162 = vrot.lane.b32.xlu0 %v1161, 64
    %v1163 = vpop.permute.xlu0 %1162
    %v1165 = vsel %vm182, %v1158, %v1163
    %v1167 = vrot.slane %v1165, 6
    %v1168 = vsel %vm184, %v1167, 0
    %1170 = vmatprep.subr.mxu0 0.0
    %1171 = vmatpush1.msra.mxu0 0.0
    %1172 = vmatprep.subr.mxu0 0.0
    %1173 = vmatpush1.msra.mxu0 0.0
    %1174 = vmatprep.subr.mxu0 0.0
    %1175 = vmatpush1.msra.mxu0 0.0
    %1176 = vmatprep.subr.mxu0 0.0
    %1177 = vmatpush1.msra.mxu0 0.0
    %1178 = vmatprep.subr.mxu0 0.0
    %1179 = vmatpush1.msra.mxu0 0.0
    %1180 = vmatprep.subr.mxu0 0.0
    %1181 = vmatpush1.msra.mxu0 0.0
    %1182 = vmatprep.subr.mxu0 0.0
    %1183 = vmatpush1.msra.mxu0 0.0
    %1184 = vmatprep.subr.mxu0 0.0
    %1185 = vmatpush1.msra.mxu0 0.0
    %1186 = vmatprep.subr.mxu0 %v50
    %1187 = vmatpush1.msra.mxu0 %v49
    %1188 = vmatprep.subr.mxu0 %v48
    %1189 = vmatpush1.msra.mxu0 %v47
    %1190 = vmatprep.subr.mxu0 %v46
    %1191 = vmatpush1.msra.mxu0 %v45
    %1192 = vmatprep.subr.mxu0 %v44
    %1193 = vmatpush1.msra.mxu0 %v43
    %1194 = vmatprep.subr.mxu0 %v42
    %1195 = vmatpush1.msra.mxu0 %v41
    %1196 = vmatprep.subr.mxu0 %v40
    %1197 = vmatpush1.msra.mxu0 %v39
    %1198 = vmatprep.subr.mxu0 %v38
    %1199 = vmatpush1.msra.mxu0 %v37
    %1200 = vmatprep.subr.mxu0 %v36
    %1201 = vmatpush1.msra.mxu0 %v35
    %1202 = vmatprep.subr.mxu0 0.0
    %1203 = vmatpush2.msra.mxu0 0.0
    %1204 = vmatprep.subr.mxu0 0.0
    %1205 = vmatpush2.msra.mxu0 0.0
    %1206 = vmatprep.subr.mxu0 0.0
    %1207 = vmatpush2.msra.mxu0 0.0
    %1208 = vmatprep.subr.mxu0 0.0
    %1209 = vmatpush2.msra.mxu0 0.0
    %1210 = vmatprep.subr.mxu0 0.0
    %1211 = vmatpush2.msra.mxu0 0.0
    %1212 = vmatprep.subr.mxu0 0.0
    %1213 = vmatpush2.msra.mxu0 0.0
    %1214 = vmatprep.subr.mxu0 0.0
    %1215 = vmatpush2.msra.mxu0 0.0
    %1216 = vmatprep.subr.mxu0 0.0
    %1217 = vmatpush2.msra.mxu0 0.0
    %1218 = vmatprep.subr.mxu0 0.0
    %1219 = vmatpush2.msra.mxu0 0.0
    %1220 = vmatprep.subr.mxu0 0.0
    %1221 = vmatpush2.msra.mxu0 0.0
    %1222 = vmatprep.subr.mxu0 0.0
    %1223 = vmatpush2.msra.mxu0 0.0
    %1224 = vmatprep.subr.mxu0 0.0
    %1225 = vmatpush2.msra.mxu0 0.0
    %1226 = vmatprep.subr.mxu0 0.0
    %1227 = vmatpush2.msra.mxu0 0.0
    %1228 = vmatprep.subr.mxu0 0.0
    %1229 = vmatpush2.msra.mxu0 0.0
    %1230 = vmatprep.subr.mxu0 0.0
    %1231 = vmatpush2.msra.mxu0 0.0
    %1232 = vmatprep.subr.mxu0 0.0
    %1233 = vmatpush2.msra.mxu0 0.0
    %1234 = vmatprep.mubr.f32.mxu0 0.0
    %1235 = vmatmul.mubr.f32.gmra.mxu0 %v1168
    %v1236 = vpop.f32.mrf.mxu0
    %v1237 = vpop.f32.mrf.mxu0
    %v1238 = vadd.f32 0.0, %v1237
    %1239 = vdwg.mxu0
    %v1240 = vadd.f32 %v1238, %v56
    %v1241 = vxor.u32 %v1240, 2147483648
    %v1242 = vmul.f32 %v1241, 1.442695
    %v1243 = vpow.pop %v1242
    %v1244 = vadd.f32 %v1243, 1.0
    %v1245 = vrcp.pop %v1244
    %v1246 = vmul.f32 1.0, %v1245
    %v1247 = vtanh.pop %v1240
    %v1248 = vmul.f32 %v1246, %v1118
    %1250 = vrot.lane.b32.xlu0 %v1247, 64
    %v1251 = vpop.permute.xlu0 %1250
    %v1253 = vmul.f32 %v1246, %v1251
    %1255 = vrot.lane.b32.xlu0 %v1253, 32
    %v1256 = vpop.permute.xlu0 %1255
    %v1258 = vadd.f32 %v1248, %v1256
    %v1259 = vtanh.pop %v1258
    %1261 = vrot.lane.b32.xlu0 %v1259, 64
    %v1262 = vpop.permute.xlu0 %1261
    %v1264 = vmul.f32 %v1246, %v1262
    %1265 = vrot.lane.b32.xlu0 %v283, 32
    %v1266 = vpop.permute.xlu0 %1265
    %1268 = vrot.lane.b32.xlu0 %v424, 64
    %v1269 = vpop.permute.xlu0 %1268
    %1271 = vrot.lane.b32.xlu0 %v565, 96
    %v1272 = vpop.permute.xlu0 %1271
    %1274 = vrot.lane.b32.xlu0 %v842, 32
    %v1275 = vpop.permute.xlu0 %1274
    %1277 = vrot.lane.b32.xlu0 %v983, 64
    %v1278 = vpop.permute.xlu0 %1277
    %1280 = vrot.lane.b32.xlu0 %v1124, 96
    %v1281 = vpop.permute.xlu0 %1280
    %v1283 = vsel %vm182, %v1266, %v1269
    %v1284 = vsel %vm184, %v1283, %v1272
    %vm1285 = vcmask 785408
    %v1286 = vsel %vm1285, %v1284, %v706
    %v1287 = vsel %vm182, %v1275, %v1278
    %v1288 = vsel %vm184, %v1287, %v1281
    %v1289 = vsel %vm1285, %v1288, %v1264
    %v1292 = vcombine.low %v1286, %v1289
    %v1294 = vunpack.c.l.s4 1983009808
    %v1295 = vunpack.c.0.s8 %v1294
    %v1296 = vlaneseq
    %v1297 = vshrl.u32 %v1296, 7
    %v1298 = vsub.s32 %v1295, %v1297
    %v1299 = vrot.slane %v1292, %v1298
    %1301 = vst [vmem:[#allocation5] sm:$0xf] %v1299
    // Predicated region
    $region26: #{tpu_custom_call.1} parent=1 // pred_check
      _
    $region27: #{tpu_custom_call.1} parent=1 // pred_check_branch
      %1303 = sbr.rel (0) target = $region29
    $region28: #{tpu_custom_call.1} parent=1 // pred_region
      %s1305 = ssub.s32 64, 64
      %1306 = vsyncadd [#allocation4], %s1305
      %s1308 = sshll.u32 [#allocation5], 4
      %s1309 = int_to_ptr.vmem [resolvable:$true] %s1308
      %1311 = dma.vmem_to_hbm [thread:$0]  %s1309, 64, %s5, [#allocation4]
    $region29: #{tpu_custom_call.1} parent=1 // pred_fallthru
      _
    // Predicated region
    $region30: #{tpu_custom_call.1} parent=1 // pred_check
      _
    $region31: #{tpu_custom_call.1} parent=1 // pred_check_branch
      %1313 = sbr.rel (0) target = $region33
    $region32: #{tpu_custom_call.1} parent=1 // pred_region
      %1314 = dma.done [#allocation4], 64
    $region33: #{tpu_custom_call.1} parent=1 // pred_fallthru
      _
    %1315 = vsyncpa [#allocation3], 1
    %1316 = vsyncpa [#allocation4], 1

</llo_original>
